<compile_context>
chip_gen: v5e
topology: v5e:2x2
jax: 0.10.0
libtpu: 0.0.40
codegen_flags: <defaults>
</compile_context>

<pallas_src>
import functools

import jax
import jax.numpy as jnp
from jax.experimental import pallas as pl
from jax.experimental.pallas import tpu as pltpu

RXN_CLASS_DIM = 2272  # fixed by FFNAgentHeadWithReactionClass


def _round_up(x, m):
    return (x + m - 1) // m * m


def _make_mlp_kernel(n_hidden):
    """Whole MLP for one batch tile; concat fused as three dot-accumulates."""

    def kernel(fp_ref, ag_ref, rc_ref,
               w_fp_ref, w_ag_ref, w_rc_ref, b_in_ref, *rest):
        # rest = [w_h0, b_h0, ..., w_h{n-1}, b_h{n-1}, w_out, b_out, o_ref]
        hidden = rest[:2 * n_hidden]
        w_out_ref, b_out_ref, o_ref = rest[2 * n_hidden:]

        # Input layer: [fp | ag | rc] @ W_in == fp@W_fp + ag@W_ag + rc@W_rc
        acc = jnp.dot(fp_ref[...], w_fp_ref[...], preferred_element_type=jnp.float32)
        acc += jnp.dot(ag_ref[...], w_ag_ref[...], preferred_element_type=jnp.float32)
        acc += jnp.dot(rc_ref[...], w_rc_ref[...], preferred_element_type=jnp.float32)
        h = jnp.maximum(acc + b_in_ref[...], 0.0).astype(fp_ref.dtype)

        # (n_blocks - 1) hidden layers + ReLU (static unroll; n_blocks is small)
        for li in range(n_hidden):
            w_ref = hidden[2 * li]
            b_ref = hidden[2 * li + 1]
            hh = jnp.dot(h, w_ref[...], preferred_element_type=jnp.float32)
            h = jnp.maximum(hh + b_ref[...], 0.0).astype(fp_ref.dtype)

        # Output layer (no activation)
        out = jnp.dot(h, w_out_ref[...], preferred_element_type=jnp.float32)
        o_ref[...] = (out + b_out_ref[...]).astype(o_ref.dtype)

    return kernel


def init_params(key, fp_dim, agent_input_dim, output_dim, hidden_dim, n_blocks):
    """Deterministic synthetic parameters matching the module's shapes (f32)."""
    input_dim = fp_dim * 2 + agent_input_dim + RXN_CLASS_DIM
    n_hidden = max(n_blocks - 1, 0)
    ks = jax.random.split(key, 6)
    scale = 0.02
    return {
        "w_in": scale * jax.random.normal(ks[0], (input_dim, hidden_dim), jnp.float32),
        "b_in": scale * jax.random.normal(ks[1], (hidden_dim,), jnp.float32),
        "w_hid": scale * jax.random.normal(ks[2], (n_hidden, hidden_dim, hidden_dim), jnp.float32),
        "b_hid": scale * jax.random.normal(ks[3], (n_hidden, hidden_dim), jnp.float32),
        "w_out": scale * jax.random.normal(ks[4], (hidden_dim, output_dim), jnp.float32),
        "b_out": scale * jax.random.normal(ks[5], (output_dim,), jnp.float32),
    }


def prepare_padded_params(params, fp_dim, agent_input_dim):
    """One-time (model-load) weight padding + bf16 cast.

    Splits W_in's rows into the three concat blocks so the kernel can fuse the
    concat. Weights -> bf16; biases stay f32 (added to the f32 accumulator).
    Zero-padding is exact: padded hidden ReLU units are relu(0) = 0.
    """
    D_fp = fp_dim * 2
    D_ag = agent_input_dim
    H = params["w_in"].shape[1]
    O = params["w_out"].shape[1]
    n_hidden = params["w_hid"].shape[0]

    D_fp_p = _round_up(D_fp, 128)
    D_ag_p = _round_up(D_ag, 128)
    D_rc_p = _round_up(RXN_CLASS_DIM, 128)
    H_p = _round_up(H, 128)
    O_p = _round_up(O, 128)

    w_in = params["w_in"]
    w_fp = w_in[:D_fp]
    w_ag = w_in[D_fp:D_fp + D_ag]
    w_rc = w_in[D_fp + D_ag:]

    def pad_w(w, rows, cols):
        return (jnp.zeros((rows, cols), jnp.bfloat16)
                .at[:w.shape[0], :w.shape[1]].set(w.astype(jnp.bfloat16)))

    def pad_b(b, cols):
        return jnp.zeros((1, cols), jnp.float32).at[0, :b.shape[0]].set(b)

    padded = {
        "w_fp": pad_w(w_fp, D_fp_p, H_p),
        "w_ag": pad_w(w_ag, D_ag_p, H_p),
        "w_rc": pad_w(w_rc, D_rc_p, H_p),
        "b_in": pad_b(params["b_in"], H_p),
        "w_hid": [pad_w(params["w_hid"][i], H_p, H_p) for i in range(n_hidden)],
        "b_hid": [pad_b(params["b_hid"][i], H_p) for i in range(n_hidden)],
        "w_out": pad_w(params["w_out"], H_p, O_p),
        "b_out": pad_b(params["b_out"], O_p),
    }
    return padded


@functools.partial(jax.jit, static_argnames=("output_dim", "batch_tile"))
def ffn_agent_head_with_reaction_class(rxn_fp, agent_input, rxn_class, padded,
                                       output_dim, batch_tile=256):
    """Forward pass. `padded` comes from prepare_padded_params (done once)."""
    B = rxn_fp.shape[0]
    D_fp_p, H_p = padded["w_fp"].shape
    D_ag_p = padded["w_ag"].shape[0]
    D_rc_p = padded["w_rc"].shape[0]
    O_p = padded["w_out"].shape[1]
    n_hidden = len(padded["w_hid"])

    # MXU-friendly batch tile (multiple of 8; 256 default for v6e/v7x rows),
    # shrunk for tiny batches so the test case stays small.
    tile = min(batch_tile, _round_up(max(B, 1), 8))
    B_pad = _round_up(B, tile)
    grid = (B_pad // tile,)

    def pad_input(x, d_p):
        return (jnp.zeros((B_pad, d_p), jnp.bfloat16)
                .at[:B, :x.shape[1]].set(x.astype(jnp.bfloat16)))

    fp_p = pad_input(rxn_fp, D_fp_p)
    ag_p = pad_input(agent_input, D_ag_p)
    rc_p = pad_input(rxn_class, D_rc_p)

    # Inputs: activation tiles stream over the grid; weights/biases use a
    # constant index_map so they stay VMEM-resident across grid steps.
    in_specs = [
        pl.BlockSpec((tile, D_fp_p), lambda i: (i, 0)),
        pl.BlockSpec((tile, D_ag_p), lambda i: (i, 0)),
        pl.BlockSpec((tile, D_rc_p), lambda i: (i, 0)),
        pl.BlockSpec((D_fp_p, H_p), lambda i: (0, 0)),
        pl.BlockSpec((D_ag_p, H_p), lambda i: (0, 0)),
        pl.BlockSpec((D_rc_p, H_p), lambda i: (0, 0)),
        pl.BlockSpec((1, H_p), lambda i: (0, 0)),
    ]
    args = [fp_p, ag_p, rc_p,
            padded["w_fp"], padded["w_ag"], padded["w_rc"], padded["b_in"]]
    for li in range(n_hidden):
        in_specs.append(pl.BlockSpec((H_p, H_p), lambda i: (0, 0)))
        in_specs.append(pl.BlockSpec((1, H_p), lambda i: (0, 0)))
        args.append(padded["w_hid"][li])
        args.append(padded["b_hid"][li])
    in_specs.append(pl.BlockSpec((H_p, O_p), lambda i: (0, 0)))
    in_specs.append(pl.BlockSpec((1, O_p), lambda i: (0, 0)))
    args.append(padded["w_out"])
    args.append(padded["b_out"])

    # Advisory cost estimate so XLA overlaps the input padding with the call.
    D_in_p = D_fp_p + D_ag_p + D_rc_p
    flops = 2 * B_pad * (D_in_p * H_p + n_hidden * H_p * H_p + H_p * O_p)
    bytes_accessed = (2 * B_pad * D_in_p                                   # bf16 activations
                      + 2 * (D_in_p * H_p + n_hidden * H_p * H_p + H_p * O_p)  # bf16 weights
                      + 4 * ((n_hidden + 1) * H_p + O_p)                   # f32 biases
                      + 4 * B_pad * O_p)                                   # f32 output
    cost = pl.CostEstimate(flops=flops, transcendentals=0,
                           bytes_accessed=bytes_accessed)

    out_padded = pl.pallas_call(
        _make_mlp_kernel(n_hidden),
        out_shape=jax.ShapeDtypeStruct((B_pad, O_p), jnp.float32),
        grid_spec=pltpu.PrefetchScalarGridSpec(
            num_scalar_prefetch=0,
            grid=grid,
            in_specs=in_specs,
            out_specs=pl.BlockSpec((tile, O_p), lambda i: (i, 0)),
        ),
        compiler_params=pltpu.CompilerParams(
            dimension_semantics=("parallel",)),
        cost_estimate=cost,
    )(*args)

    return out_padded[:B, :output_dim]


def _reference_forward(rxn_fp, agent_input, rxn_class, params):
    """Plain-JAX f32 reference for correctness checking."""
    x = jnp.concatenate([rxn_fp, agent_input, rxn_class], axis=1).astype(jnp.float32)
    h = jnp.maximum(x @ params["w_in"] + params["b_in"], 0.0)
    for i in range(params["w_hid"].shape[0]):
        h = jnp.maximum(h @ params["w_hid"][i] + params["b_hid"][i], 0.0)
    return h @ params["w_out"] + params["b_out"]


if __name__ == "__main__":
    # Small, module-consistent shapes.
    B = 2
    fp_dim = 256            # rxn_fp has width fp_dim * 2 = 512
    agent_input_dim = 64
    output_dim = 128
    hidden_dim = 128
    n_blocks = 3

    key = jax.random.PRNGKey(0)
    k1, k2, k3, kp = jax.random.split(key, 4)
    rxn_fp = jax.random.normal(k1, (B, fp_dim * 2), jnp.float32)
    agent_input = jax.random.normal(k2, (B, agent_input_dim), jnp.float32)
    rxn_class = jax.random.normal(k3, (B, RXN_CLASS_DIM), jnp.float32)

    params = init_params(kp, fp_dim, agent_input_dim, output_dim, hidden_dim, n_blocks)
    # Weight padding / bf16 cast happens ONCE here (model-load time), not per call.
    padded = prepare_padded_params(params, fp_dim, agent_input_dim)

    out = ffn_agent_head_with_reaction_class(rxn_fp, agent_input, rxn_class,
                                             padded, output_dim=output_dim)
    out = jax.block_until_ready(out)

    ref = _reference_forward(rxn_fp, agent_input, rxn_class, params)
    assert out.shape == (B, output_dim), out.shape
    # bf16 inputs/weights with f32 accumulation -> loosened tolerance vs f32 reference.
    assert jnp.allclose(out, ref, atol=1e-2, rtol=1e-2), "mismatch vs f32 reference"

    print("KERNEL_OK")
</pallas_src>

<mosaic_0001>
module attributes {stable_mosaic.version = 11 : i64} {
  func.func @kernel(%arg0: i32, %arg1: memref<8x512xbf16, #tpu.memory_space<vmem>>, %arg2: memref<8x128xbf16, #tpu.memory_space<vmem>>, %arg3: memref<8x2304xbf16, #tpu.memory_space<vmem>>, %arg4: memref<512x128xbf16, #tpu.memory_space<vmem>>, %arg5: memref<128x128xbf16, #tpu.memory_space<vmem>>, %arg6: memref<2304x128xbf16, #tpu.memory_space<vmem>>, %arg7: memref<1x128xf32, #tpu.memory_space<vmem>>, %arg8: memref<128x128xbf16, #tpu.memory_space<vmem>>, %arg9: memref<1x128xf32, #tpu.memory_space<vmem>>, %arg10: memref<128x128xbf16, #tpu.memory_space<vmem>>, %arg11: memref<1x128xf32, #tpu.memory_space<vmem>>, %arg12: memref<128x128xbf16, #tpu.memory_space<vmem>>, %arg13: memref<1x128xf32, #tpu.memory_space<vmem>>, %arg14: memref<8x128xf32, #tpu.memory_space<vmem>>) attributes {dimension_semantics = [#tpu.dimension_semantics<parallel>], iteration_bounds = array<i64: 1>, scalar_prefetch = 0 : i64, scratch_operands = 0 : i64, tpu.core_type = #tpu.core_type<tc>, window_params = [{transform_indices = @transform_0, window_bounds = array<i64: 8, 512>}, {transform_indices = @transform_1, window_bounds = array<i64: 8, 128>}, {transform_indices = @transform_2, window_bounds = array<i64: 8, 2304>}, {pipeline_mode = #tpu.pipeline_mode<synchronous>, transform_indices = @transform_3, window_bounds = array<i64: 512, 128>}, {pipeline_mode = #tpu.pipeline_mode<synchronous>, transform_indices = @transform_4, window_bounds = array<i64: 128, 128>}, {pipeline_mode = #tpu.pipeline_mode<synchronous>, transform_indices = @transform_5, window_bounds = array<i64: 2304, 128>}, {pipeline_mode = #tpu.pipeline_mode<synchronous>, transform_indices = @transform_6, window_bounds = array<i64: 1, 128>}, {pipeline_mode = #tpu.pipeline_mode<synchronous>, transform_indices = @transform_7, window_bounds = array<i64: 128, 128>}, {pipeline_mode = #tpu.pipeline_mode<synchronous>, transform_indices = @transform_8, window_bounds = array<i64: 1, 128>}, {pipeline_mode = #tpu.pipeline_mode<synchronous>, transform_indices = @transform_9, window_bounds = array<i64: 128, 128>}, {pipeline_mode = #tpu.pipeline_mode<synchronous>, transform_indices = @transform_10, window_bounds = array<i64: 1, 128>}, {pipeline_mode = #tpu.pipeline_mode<synchronous>, transform_indices = @transform_11, window_bounds = array<i64: 128, 128>}, {pipeline_mode = #tpu.pipeline_mode<synchronous>, transform_indices = @transform_12, window_bounds = array<i64: 1, 128>}, {transform_indices = @transform_13, window_bounds = array<i64: 8, 128>}]} {
    %c0 = arith.constant 0 : index
    %c0_0 = arith.constant 0 : index
    %0 = vector.load %arg1[%c0, %c0_0] : memref<8x512xbf16, #tpu.memory_space<vmem>>, vector<8x512xbf16>
    %c0_1 = arith.constant 0 : index
    %c0_2 = arith.constant 0 : index
    %1 = vector.load %arg4[%c0_1, %c0_2] : memref<512x128xbf16, #tpu.memory_space<vmem>>, vector<512x128xbf16>
    %cst = arith.constant dense<0.000000e+00> : vector<8x128xf32>
    %2 = tpu.matmul %0, %1, %cst {dimension_numbers = #tpu.dot_dimension_numbers<[1], [0], [0], [1], [0, 0, 1, 1], [], []>} : vector<8x512xbf16>, vector<512x128xbf16>, vector<8x128xf32> -> vector<8x128xf32>
    %c0_3 = arith.constant 0 : index
    %c0_4 = arith.constant 0 : index
    %3 = vector.load %arg2[%c0_3, %c0_4] : memref<8x128xbf16, #tpu.memory_space<vmem>>, vector<8x128xbf16>
    %c0_5 = arith.constant 0 : index
    %c0_6 = arith.constant 0 : index
    %4 = vector.load %arg5[%c0_5, %c0_6] : memref<128x128xbf16, #tpu.memory_space<vmem>>, vector<128x128xbf16>
    %cst_7 = arith.constant dense<0.000000e+00> : vector<8x128xf32>
    %5 = tpu.matmul %3, %4, %cst_7 {dimension_numbers = #tpu.dot_dimension_numbers<[1], [0], [0], [1], [0, 0, 1, 1], [], []>} : vector<8x128xbf16>, vector<128x128xbf16>, vector<8x128xf32> -> vector<8x128xf32>
    %6 = arith.addf %2, %5 : vector<8x128xf32>
    %c0_8 = arith.constant 0 : index
    %c0_9 = arith.constant 0 : index
    %7 = vector.load %arg3[%c0_8, %c0_9] : memref<8x2304xbf16, #tpu.memory_space<vmem>>, vector<8x2304xbf16>
    %c0_10 = arith.constant 0 : index
    %c0_11 = arith.constant 0 : index
    %8 = vector.load %arg6[%c0_10, %c0_11] : memref<2304x128xbf16, #tpu.memory_space<vmem>>, vector<2304x128xbf16>
    %cst_12 = arith.constant dense<0.000000e+00> : vector<8x128xf32>
    %9 = tpu.matmul %7, %8, %cst_12 {dimension_numbers = #tpu.dot_dimension_numbers<[1], [0], [0], [1], [0, 0, 1, 1], [], []>} : vector<8x2304xbf16>, vector<2304x128xbf16>, vector<8x128xf32> -> vector<8x128xf32>
    %10 = arith.addf %6, %9 : vector<8x128xf32>
    %c0_13 = arith.constant 0 : index
    %c0_14 = arith.constant 0 : index
    %11 = vector.load %arg7[%c0_13, %c0_14] : memref<1x128xf32, #tpu.memory_space<vmem>>, vector<1x128xf32>
    %12 = vector.broadcast %11 : vector<1x128xf32> to vector<8x128xf32>
    %13 = arith.addf %10, %12 : vector<8x128xf32>
    %cst_15 = arith.constant 0.000000e+00 : f32
    %14 = vector.broadcast %cst_15 : f32 to vector<8x128xf32>
    %15 = arith.maximumf %13, %14 : vector<8x128xf32>
    %16 = arith.truncf %15 : vector<8x128xf32> to vector<8x128xbf16>
    %c0_16 = arith.constant 0 : index
    %c0_17 = arith.constant 0 : index
    %17 = vector.load %arg8[%c0_16, %c0_17] : memref<128x128xbf16, #tpu.memory_space<vmem>>, vector<128x128xbf16>
    %cst_18 = arith.constant dense<0.000000e+00> : vector<8x128xf32>
    %18 = tpu.matmul %16, %17, %cst_18 {dimension_numbers = #tpu.dot_dimension_numbers<[1], [0], [0], [1], [0, 0, 1, 1], [], []>} : vector<8x128xbf16>, vector<128x128xbf16>, vector<8x128xf32> -> vector<8x128xf32>
    %c0_19 = arith.constant 0 : index
    %c0_20 = arith.constant 0 : index
    %19 = vector.load %arg9[%c0_19, %c0_20] : memref<1x128xf32, #tpu.memory_space<vmem>>, vector<1x128xf32>
    %20 = vector.broadcast %19 : vector<1x128xf32> to vector<8x128xf32>
    %21 = arith.addf %18, %20 : vector<8x128xf32>
    %cst_21 = arith.constant 0.000000e+00 : f32
    %22 = vector.broadcast %cst_21 : f32 to vector<8x128xf32>
    %23 = arith.maximumf %21, %22 : vector<8x128xf32>
    %24 = arith.truncf %23 : vector<8x128xf32> to vector<8x128xbf16>
    %c0_22 = arith.constant 0 : index
    %c0_23 = arith.constant 0 : index
    %25 = vector.load %arg10[%c0_22, %c0_23] : memref<128x128xbf16, #tpu.memory_space<vmem>>, vector<128x128xbf16>
    %cst_24 = arith.constant dense<0.000000e+00> : vector<8x128xf32>
    %26 = tpu.matmul %24, %25, %cst_24 {dimension_numbers = #tpu.dot_dimension_numbers<[1], [0], [0], [1], [0, 0, 1, 1], [], []>} : vector<8x128xbf16>, vector<128x128xbf16>, vector<8x128xf32> -> vector<8x128xf32>
    %c0_25 = arith.constant 0 : index
    %c0_26 = arith.constant 0 : index
    %27 = vector.load %arg11[%c0_25, %c0_26] : memref<1x128xf32, #tpu.memory_space<vmem>>, vector<1x128xf32>
    %28 = vector.broadcast %27 : vector<1x128xf32> to vector<8x128xf32>
    %29 = arith.addf %26, %28 : vector<8x128xf32>
    %cst_27 = arith.constant 0.000000e+00 : f32
    %30 = vector.broadcast %cst_27 : f32 to vector<8x128xf32>
    %31 = arith.maximumf %29, %30 : vector<8x128xf32>
    %32 = arith.truncf %31 : vector<8x128xf32> to vector<8x128xbf16>
    %c0_28 = arith.constant 0 : index
    %c0_29 = arith.constant 0 : index
    %33 = vector.load %arg12[%c0_28, %c0_29] : memref<128x128xbf16, #tpu.memory_space<vmem>>, vector<128x128xbf16>
    %cst_30 = arith.constant dense<0.000000e+00> : vector<8x128xf32>
    %34 = tpu.matmul %32, %33, %cst_30 {dimension_numbers = #tpu.dot_dimension_numbers<[1], [0], [0], [1], [0, 0, 1, 1], [], []>} : vector<8x128xbf16>, vector<128x128xbf16>, vector<8x128xf32> -> vector<8x128xf32>
    %c0_31 = arith.constant 0 : index
    %c0_32 = arith.constant 0 : index
    %35 = vector.load %arg13[%c0_31, %c0_32] : memref<1x128xf32, #tpu.memory_space<vmem>>, vector<1x128xf32>
    %36 = vector.broadcast %35 : vector<1x128xf32> to vector<8x128xf32>
    %37 = arith.addf %34, %36 : vector<8x128xf32>
    %c0_33 = arith.constant 0 : index
    %c0_34 = arith.constant 0 : index
    %38 = vector.load %arg14[%c0_33, %c0_34] : memref<8x128xf32, #tpu.memory_space<vmem>>, vector<8x128xf32>
    tpu.vector_store %arg14[%c0_33, %c0_34], %37 {strides = array<i32>} : memref<8x128xf32, #tpu.memory_space<vmem>>, vector<8x128xf32>,
    return
  }
  func.func @transform_0(%arg0: i32) -> (i32, i32) {
    %c0_i32 = arith.constant 0 : i32
    %c0_i32_0 = arith.constant 0 : i32
    return %arg0, %c0_i32 : i32, i32
  }
  func.func @transform_1(%arg0: i32) -> (i32, i32) {
    %c0_i32 = arith.constant 0 : i32
    %c0_i32_0 = arith.constant 0 : i32
    return %arg0, %c0_i32 : i32, i32
  }
  func.func @transform_2(%arg0: i32) -> (i32, i32) {
    %c0_i32 = arith.constant 0 : i32
    %c0_i32_0 = arith.constant 0 : i32
    return %arg0, %c0_i32 : i32, i32
  }
  func.func @transform_3(%arg0: i32) -> (i32, i32) {
    %c0_i32 = arith.constant 0 : i32
    %c0_i32_0 = arith.constant 0 : i32
    %c0_i32_1 = arith.constant 0 : i32
    return %c0_i32, %c0_i32_0 : i32, i32
  }
  func.func @transform_4(%arg0: i32) -> (i32, i32) {
    %c0_i32 = arith.constant 0 : i32
    %c0_i32_0 = arith.constant 0 : i32
    %c0_i32_1 = arith.constant 0 : i32
    return %c0_i32, %c0_i32_0 : i32, i32
  }
  func.func @transform_5(%arg0: i32) -> (i32, i32) {
    %c0_i32 = arith.constant 0 : i32
    %c0_i32_0 = arith.constant 0 : i32
    %c0_i32_1 = arith.constant 0 : i32
    return %c0_i32, %c0_i32_0 : i32, i32
  }
  func.func @transform_6(%arg0: i32) -> (i32, i32) {
    %c0_i32 = arith.constant 0 : i32
    %c0_i32_0 = arith.constant 0 : i32
    %c0_i32_1 = arith.constant 0 : i32
    return %c0_i32, %c0_i32_0 : i32, i32
  }
  func.func @transform_7(%arg0: i32) -> (i32, i32) {
    %c0_i32 = arith.constant 0 : i32
    %c0_i32_0 = arith.constant 0 : i32
    %c0_i32_1 = arith.constant 0 : i32
    return %c0_i32, %c0_i32_0 : i32, i32
  }
  func.func @transform_8(%arg0: i32) -> (i32, i32) {
    %c0_i32 = arith.constant 0 : i32
    %c0_i32_0 = arith.constant 0 : i32
    %c0_i32_1 = arith.constant 0 : i32
    return %c0_i32, %c0_i32_0 : i32, i32
  }
  func.func @transform_9(%arg0: i32) -> (i32, i32) {
    %c0_i32 = arith.constant 0 : i32
    %c0_i32_0 = arith.constant 0 : i32
    %c0_i32_1 = arith.constant 0 : i32
    return %c0_i32, %c0_i32_0 : i32, i32
  }
  func.func @transform_10(%arg0: i32) -> (i32, i32) {
    %c0_i32 = arith.constant 0 : i32
    %c0_i32_0 = arith.constant 0 : i32
    %c0_i32_1 = arith.constant 0 : i32
    return %c0_i32, %c0_i32_0 : i32, i32
  }
  func.func @transform_11(%arg0: i32) -> (i32, i32) {
    %c0_i32 = arith.constant 0 : i32
    %c0_i32_0 = arith.constant 0 : i32
    %c0_i32_1 = arith.constant 0 : i32
    return %c0_i32, %c0_i32_0 : i32, i32
  }
  func.func @transform_12(%arg0: i32) -> (i32, i32) {
    %c0_i32 = arith.constant 0 : i32
    %c0_i32_0 = arith.constant 0 : i32
    %c0_i32_1 = arith.constant 0 : i32
    return %c0_i32, %c0_i32_0 : i32, i32
  }
  func.func @transform_13(%arg0: i32) -> (i32, i32) {
    %c0_i32 = arith.constant 0 : i32
    %c0_i32_0 = arith.constant 0 : i32
    return %arg0, %c0_i32 : i32, i32
  }
}

</mosaic_0001>

<llo_original>
// kernel: ffn_agent_head_with_reaction_class.1
$region0: #{ffn_agent_head_with_reaction_class.1}
  #allocation0 [shape = 'u32[]', space=smem, size = 0x4, offset = 0x4, fixed_abs, tag = 'smem constant byte address 0x4 - core index']
  #allocation1 [shape = 'u32[72,128]{1,0:T(1,128)}', space=vmem, size = 0x9000, scoped, tag = 'internal scratch']
  %s0 = inlined_call_operand.vmem [shape: bf16[8,512], index: 0, kind: input, shape index: {}]
  %s1 = inlined_call_operand.vmem [shape: bf16[8,128], index: 1, kind: input, shape index: {}]
  %s2 = inlined_call_operand.vmem [shape: bf16[8,2304], index: 2, kind: input, shape index: {}]
  %s3 = inlined_call_operand.hbm [shape: bf16[512,128], index: 3, kind: input, shape index: {}]
  %s4 = inlined_call_operand.vmem [shape: bf16[128,128], index: 4, kind: input, shape index: {}]
  %s5 = inlined_call_operand.hbm [shape: bf16[2304,128], index: 5, kind: input, shape index: {}]
  %s6 = inlined_call_operand.vmem [shape: f32[1,128], index: 6, kind: input, shape index: {}]
  %s7 = inlined_call_operand.vmem [shape: bf16[128,128], index: 7, kind: input, shape index: {}]
  %s8 = inlined_call_operand.vmem [shape: f32[1,128], index: 8, kind: input, shape index: {}]
  %s9 = inlined_call_operand.hbm [shape: bf16[128,128], index: 9, kind: input, shape index: {}]
  %s10 = inlined_call_operand.vmem [shape: f32[1,128], index: 10, kind: input, shape index: {}]
  %s11 = inlined_call_operand.hbm [shape: bf16[128,128], index: 11, kind: input, shape index: {}]
  %s12 = inlined_call_operand.vmem [shape: f32[1,128], index: 12, kind: input, shape index: {}]
  %s13 = inlined_call_operand.vmem [shape: f32[8,128], index: 13, kind: output, shape index: {}]
  %s14 = sld [smem:[#allocation0]]
  $region78: #{ffn_agent_head_with_reaction_class.1} parent=0
    _
  %s16 = ssub.s32 1, %s14
  %s17 = scalar_select 0, %s16, %s14
  $region1: #{ffn_agent_head_with_reaction_class.1} parent=0
    #allocation2 [shape = 'u8[131072]{0}', space=vmem, size = 0x20000, scoped, tag = 'input window, operand 3, single buffered']
    #allocation3 [shape = 's32[1]{0}', space=sflag, size = 0x4, scoped, tag = 'scoped memory for ffn_agent_head_with_reaction_class.1']
    #allocation4 [shape = 'u8[589824]{0}', space=vmem, size = 0x90000, scoped, tag = 'input window, operand 5, single buffered']
    #allocation5 [shape = 's32[1]{0}', space=sflag, size = 0x4, scoped, tag = 'scoped memory for ffn_agent_head_with_reaction_class.1']
    #allocation6 [shape = 'u8[32768]{0}', space=vmem, size = 0x8000, scoped, tag = 'input window, operand 9, single buffered']
    #allocation7 [shape = 'u8[32768]{0}', space=vmem, size = 0x8000, scoped, tag = 'input window, operand 11, single buffered']
    #allocation8 [shape = 's32[1]{0}', space=sflag, size = 0x4, scoped, tag = 'scoped memory for ffn_agent_head_with_reaction_class.1']
    %18 = vsyncpa [#allocation3], 0
    %19 = vsyncpa [#allocation5], 0
    %20 = vsyncpa [#allocation8], 0
    // Predicated region
    $region2: #{ffn_agent_head_with_reaction_class.1} parent=1 // pred_check
      _
    $region3: #{ffn_agent_head_with_reaction_class.1} parent=1 // pred_check_branch
      %22 = sbr.rel (0) target = $region5
    $region4: #{ffn_agent_head_with_reaction_class.1} parent=1 // pred_region
      _
    $region5: #{ffn_agent_head_with_reaction_class.1} parent=1 // pred_fallthru
      _
    // Predicated region
    $region6: #{ffn_agent_head_with_reaction_class.1} parent=1 // pred_check
      _
    $region7: #{ffn_agent_head_with_reaction_class.1} parent=1 // pred_check_branch
      %24 = sbr.rel (0) target = $region9
    $region8: #{ffn_agent_head_with_reaction_class.1} parent=1 // pred_region
      _
    $region9: #{ffn_agent_head_with_reaction_class.1} parent=1 // pred_fallthru
      _
    // Predicated region
    $region10: #{ffn_agent_head_with_reaction_class.1} parent=1 // pred_check
      _
    $region11: #{ffn_agent_head_with_reaction_class.1} parent=1 // pred_check_branch
      %26 = sbr.rel (0) target = $region13
    $region12: #{ffn_agent_head_with_reaction_class.1} parent=1 // pred_region
      _
    $region13: #{ffn_agent_head_with_reaction_class.1} parent=1 // pred_fallthru
      _
    // Predicated region
    $region14: #{ffn_agent_head_with_reaction_class.1} parent=1 // pred_check
      _
    $region15: #{ffn_agent_head_with_reaction_class.1} parent=1 // pred_check_branch
      %28 = sbr.rel (0) target = $region17
    $region16: #{ffn_agent_head_with_reaction_class.1} parent=1 // pred_region
      %30 = vsyncadd [#allocation3], 0
      %s31 = sshll.u32 %s3, 4
      %s32 = int_to_ptr.hbm [resolvable:$true] %s31
      %s33 = sshll.u32 [#allocation2], 4
      %s34 = int_to_ptr.vmem [resolvable:$true] %s33
      %39 = dma.hbm_to_vmem [thread:$0]  %s32, 4096, %s34, [#allocation3], 64, 64, 4
    $region17: #{ffn_agent_head_with_reaction_class.1} parent=1 // pred_fallthru
      _
    // Predicated region
    $region18: #{ffn_agent_head_with_reaction_class.1} parent=1 // pred_check
      _
    $region19: #{ffn_agent_head_with_reaction_class.1} parent=1 // pred_check_branch
      %41 = sbr.rel (0) target = $region21
    $region20: #{ffn_agent_head_with_reaction_class.1} parent=1 // pred_region
      _
    $region21: #{ffn_agent_head_with_reaction_class.1} parent=1 // pred_fallthru
      _
    // Predicated region
    $region22: #{ffn_agent_head_with_reaction_class.1} parent=1 // pred_check
      _
    $region23: #{ffn_agent_head_with_reaction_class.1} parent=1 // pred_check_branch
      %43 = sbr.rel (0) target = $region25
    $region24: #{ffn_agent_head_with_reaction_class.1} parent=1 // pred_region
      %45 = vsyncadd [#allocation5], 0
      %s46 = sshll.u32 %s5, 4
      %s47 = int_to_ptr.hbm [resolvable:$true] %s46
      %s48 = sshll.u32 [#allocation4], 4
      %s49 = int_to_ptr.vmem [resolvable:$true] %s48
      %54 = dma.hbm_to_vmem [thread:$0]  %s47, 18432, %s49, [#allocation5], 64, 64, 4
    $region25: #{ffn_agent_head_with_reaction_class.1} parent=1 // pred_fallthru
      _
    // Predicated region
    $region26: #{ffn_agent_head_with_reaction_class.1} parent=1 // pred_check
      _
    $region27: #{ffn_agent_head_with_reaction_class.1} parent=1 // pred_check_branch
      %56 = sbr.rel (0) target = $region29
    $region28: #{ffn_agent_head_with_reaction_class.1} parent=1 // pred_region
      _
    $region29: #{ffn_agent_head_with_reaction_class.1} parent=1 // pred_fallthru
      _
    // Predicated region
    $region30: #{ffn_agent_head_with_reaction_class.1} parent=1 // pred_check
      _
    $region31: #{ffn_agent_head_with_reaction_class.1} parent=1 // pred_check_branch
      %58 = sbr.rel (0) target = $region33
    $region32: #{ffn_agent_head_with_reaction_class.1} parent=1 // pred_region
      _
    $region33: #{ffn_agent_head_with_reaction_class.1} parent=1 // pred_fallthru
      _
    // Predicated region
    $region34: #{ffn_agent_head_with_reaction_class.1} parent=1 // pred_check
      _
    $region35: #{ffn_agent_head_with_reaction_class.1} parent=1 // pred_check_branch
      %60 = sbr.rel (0) target = $region37
    $region36: #{ffn_agent_head_with_reaction_class.1} parent=1 // pred_region
      _
    $region37: #{ffn_agent_head_with_reaction_class.1} parent=1 // pred_fallthru
      _
    // Predicated region
    $region38: #{ffn_agent_head_with_reaction_class.1} parent=1 // pred_check
      _
    $region39: #{ffn_agent_head_with_reaction_class.1} parent=1 // pred_check_branch
      %62 = sbr.rel (0) target = $region41
    $region40: #{ffn_agent_head_with_reaction_class.1} parent=1 // pred_region
      %64 = vsyncadd [#allocation5], 0
      %s65 = sshll.u32 %s9, 4
      %s66 = int_to_ptr.hbm [resolvable:$true] %s65
      %s67 = sshll.u32 [#allocation6], 4
      %s68 = int_to_ptr.vmem [resolvable:$true] %s67
      %73 = dma.hbm_to_vmem [thread:$0]  %s66, 1024, %s68, [#allocation5], 64, 64, 4
    $region41: #{ffn_agent_head_with_reaction_class.1} parent=1 // pred_fallthru
      _
    // Predicated region
    $region42: #{ffn_agent_head_with_reaction_class.1} parent=1 // pred_check
      _
    $region43: #{ffn_agent_head_with_reaction_class.1} parent=1 // pred_check_branch
      %75 = sbr.rel (0) target = $region45
    $region44: #{ffn_agent_head_with_reaction_class.1} parent=1 // pred_region
      _
    $region45: #{ffn_agent_head_with_reaction_class.1} parent=1 // pred_fallthru
      _
    // Predicated region
    $region46: #{ffn_agent_head_with_reaction_class.1} parent=1 // pred_check
      _
    $region47: #{ffn_agent_head_with_reaction_class.1} parent=1 // pred_check_branch
      %77 = sbr.rel (0) target = $region49
    $region48: #{ffn_agent_head_with_reaction_class.1} parent=1 // pred_region
      %79 = vsyncadd [#allocation8], 0
      %s80 = sshll.u32 %s11, 4
      %s81 = int_to_ptr.hbm [resolvable:$true] %s80
      %s82 = sshll.u32 [#allocation7], 4
      %s83 = int_to_ptr.vmem [resolvable:$true] %s82
      %88 = dma.hbm_to_vmem [thread:$0]  %s81, 1024, %s83, [#allocation8], 64, 64, 4
    $region49: #{ffn_agent_head_with_reaction_class.1} parent=1 // pred_fallthru
      _
    // Predicated region
    $region50: #{ffn_agent_head_with_reaction_class.1} parent=1 // pred_check
      _
    $region51: #{ffn_agent_head_with_reaction_class.1} parent=1 // pred_check_branch
      %90 = sbr.rel (0) target = $region53
    $region52: #{ffn_agent_head_with_reaction_class.1} parent=1 // pred_region
      _
    $region53: #{ffn_agent_head_with_reaction_class.1} parent=1 // pred_fallthru
      _
    // Predicated region
    $region54: #{ffn_agent_head_with_reaction_class.1} parent=1 // pred_check
      _
    $region55: #{ffn_agent_head_with_reaction_class.1} parent=1 // pred_check_branch
      %92 = sbr.rel (0) target = $region57
    $region56: #{ffn_agent_head_with_reaction_class.1} parent=1 // pred_region
      %94 = dma.done [#allocation3], 4096
    $region57: #{ffn_agent_head_with_reaction_class.1} parent=1 // pred_fallthru
      _
    // Predicated region
    $region58: #{ffn_agent_head_with_reaction_class.1} parent=1 // pred_check
      _
    $region59: #{ffn_agent_head_with_reaction_class.1} parent=1 // pred_check_branch
      %96 = sbr.rel (0) target = $region61
    $region60: #{ffn_agent_head_with_reaction_class.1} parent=1 // pred_region
      %98 = dma.done [#allocation5], 18432
    $region61: #{ffn_agent_head_with_reaction_class.1} parent=1 // pred_fallthru
      _
    // Predicated region
    $region62: #{ffn_agent_head_with_reaction_class.1} parent=1 // pred_check
      _
    $region63: #{ffn_agent_head_with_reaction_class.1} parent=1 // pred_check_branch
      %100 = sbr.rel (0) target = $region65
    $region64: #{ffn_agent_head_with_reaction_class.1} parent=1 // pred_region
      %102 = dma.done [#allocation5], 1024
    $region65: #{ffn_agent_head_with_reaction_class.1} parent=1 // pred_fallthru
      _
    // Predicated region
    $region66: #{ffn_agent_head_with_reaction_class.1} parent=1 // pred_check
      _
    $region67: #{ffn_agent_head_with_reaction_class.1} parent=1 // pred_check_branch
      %104 = sbr.rel (0) target = $region69
    $region68: #{ffn_agent_head_with_reaction_class.1} parent=1 // pred_region
      %106 = dma.done [#allocation8], 1024
    $region69: #{ffn_agent_head_with_reaction_class.1} parent=1 // pred_fallthru
      _
    %v107 = vld [vmem:[%s0] sm:$0xff]
    %v108 = vld [vmem:[%s0 + $0x8] sm:$0xff]
    %v109 = vld [vmem:[#allocation2] sm:$0xf]
    %v110 = vld [vmem:[#allocation2 + $0x4] sm:$0xf]
    %v111 = vld [vmem:[#allocation2 + $0x8] sm:$0xf]
    %v112 = vld [vmem:[#allocation2 + $0xc] sm:$0xf]
    %v113 = vld [vmem:[#allocation2 + $0x10] sm:$0xf]
    %v114 = vld [vmem:[#allocation2 + $0x14] sm:$0xf]
    %v115 = vld [vmem:[#allocation2 + $0x18] sm:$0xf]
    %v116 = vld [vmem:[#allocation2 + $0x1c] sm:$0xf]
    %v117 = vld [vmem:[#allocation2 + $0x20] sm:$0xf]
    %v118 = vld [vmem:[#allocation2 + $0x24] sm:$0xf]
    %v119 = vld [vmem:[#allocation2 + $0x28] sm:$0xf]
    %v120 = vld [vmem:[#allocation2 + $0x2c] sm:$0xf]
    %v121 = vld [vmem:[#allocation2 + $0x30] sm:$0xf]
    %v122 = vld [vmem:[#allocation2 + $0x34] sm:$0xf]
    %v123 = vld [vmem:[#allocation2 + $0x38] sm:$0xf]
    %v124 = vld [vmem:[#allocation2 + $0x3c] sm:$0xf]
    %v125 = vld [vmem:[#allocation2 + $0x40] sm:$0xf]
    %v126 = vld [vmem:[#allocation2 + $0x44] sm:$0xf]
    %v127 = vld [vmem:[#allocation2 + $0x48] sm:$0xf]
    %v128 = vld [vmem:[#allocation2 + $0x4c] sm:$0xf]
    %v129 = vld [vmem:[#allocation2 + $0x50] sm:$0xf]
    %v130 = vld [vmem:[#allocation2 + $0x54] sm:$0xf]
    %v131 = vld [vmem:[#allocation2 + $0x58] sm:$0xf]
    %v132 = vld [vmem:[#allocation2 + $0x5c] sm:$0xf]
    %v133 = vld [vmem:[#allocation2 + $0x60] sm:$0xf]
    %v134 = vld [vmem:[#allocation2 + $0x64] sm:$0xf]
    %v135 = vld [vmem:[#allocation2 + $0x68] sm:$0xf]
    %v136 = vld [vmem:[#allocation2 + $0x6c] sm:$0xf]
    %v137 = vld [vmem:[#allocation2 + $0x70] sm:$0xf]
    %v138 = vld [vmem:[#allocation2 + $0x74] sm:$0xf]
    %v139 = vld [vmem:[#allocation2 + $0x78] sm:$0xf]
    %v140 = vld [vmem:[#allocation2 + $0x7c] sm:$0xf]
    %v141 = vld [vmem:[#allocation2 + $0x80] sm:$0xf]
    %v142 = vld [vmem:[#allocation2 + $0x84] sm:$0xf]
    %v143 = vld [vmem:[#allocation2 + $0x88] sm:$0xf]
    %v144 = vld [vmem:[#allocation2 + $0x8c] sm:$0xf]
    %v145 = vld [vmem:[#allocation2 + $0x90] sm:$0xf]
    %v146 = vld [vmem:[#allocation2 + $0x94] sm:$0xf]
    %v147 = vld [vmem:[#allocation2 + $0x98] sm:$0xf]
    %v148 = vld [vmem:[#allocation2 + $0x9c] sm:$0xf]
    %v149 = vld [vmem:[#allocation2 + $0xa0] sm:$0xf]
    %v150 = vld [vmem:[#allocation2 + $0xa4] sm:$0xf]
    %v151 = vld [vmem:[#allocation2 + $0xa8] sm:$0xf]
    %v152 = vld [vmem:[#allocation2 + $0xac] sm:$0xf]
    %v153 = vld [vmem:[#allocation2 + $0xb0] sm:$0xf]
    %v154 = vld [vmem:[#allocation2 + $0xb4] sm:$0xf]
    %v155 = vld [vmem:[#allocation2 + $0xb8] sm:$0xf]
    %v156 = vld [vmem:[#allocation2 + $0xbc] sm:$0xf]
    %v157 = vld [vmem:[#allocation2 + $0xc0] sm:$0xf]
    %v158 = vld [vmem:[#allocation2 + $0xc4] sm:$0xf]
    %v159 = vld [vmem:[#allocation2 + $0xc8] sm:$0xf]
    %v160 = vld [vmem:[#allocation2 + $0xcc] sm:$0xf]
    %v161 = vld [vmem:[#allocation2 + $0xd0] sm:$0xf]
    %v162 = vld [vmem:[#allocation2 + $0xd4] sm:$0xf]
    %v163 = vld [vmem:[#allocation2 + $0xd8] sm:$0xf]
    %v164 = vld [vmem:[#allocation2 + $0xdc] sm:$0xf]
    %v165 = vld [vmem:[#allocation2 + $0xe0] sm:$0xf]
    %v166 = vld [vmem:[#allocation2 + $0xe4] sm:$0xf]
    %v167 = vld [vmem:[#allocation2 + $0xe8] sm:$0xf]
    %v168 = vld [vmem:[#allocation2 + $0xec] sm:$0xf]
    %v169 = vld [vmem:[#allocation2 + $0xf0] sm:$0xf]
    %v170 = vld [vmem:[#allocation2 + $0xf4] sm:$0xf]
    %v171 = vld [vmem:[#allocation2 + $0xf8] sm:$0xf]
    %v172 = vld [vmem:[#allocation2 + $0xfc] sm:$0xf]
    %v173 = vld [vmem:[%s1] sm:$0xf]
    %v174 = vld [vmem:[%s4] sm:$0xf]
    %v175 = vld [vmem:[%s4 + $0x4] sm:$0xf]
    %v176 = vld [vmem:[%s4 + $0x8] sm:$0xf]
    %v177 = vld [vmem:[%s4 + $0xc] sm:$0xf]
    %v178 = vld [vmem:[%s4 + $0x10] sm:$0xf]
    %v179 = vld [vmem:[%s4 + $0x14] sm:$0xf]
    %v180 = vld [vmem:[%s4 + $0x18] sm:$0xf]
    %v181 = vld [vmem:[%s4 + $0x1c] sm:$0xf]
    %v182 = vld [vmem:[%s4 + $0x20] sm:$0xf]
    %v183 = vld [vmem:[%s4 + $0x24] sm:$0xf]
    %v184 = vld [vmem:[%s4 + $0x28] sm:$0xf]
    %v185 = vld [vmem:[%s4 + $0x2c] sm:$0xf]
    %v186 = vld [vmem:[%s4 + $0x30] sm:$0xf]
    %v187 = vld [vmem:[%s4 + $0x34] sm:$0xf]
    %v188 = vld [vmem:[%s4 + $0x38] sm:$0xf]
    %v189 = vld [vmem:[%s4 + $0x3c] sm:$0xf]
    %v206 = vunpack.c.l.b16 %v174
    %v207 = vunpack.c.l.b16 %v175
    %v208 = vunpack.c.l.b16 %v176
    %v209 = vunpack.c.l.b16 %v177
    %v210 = vunpack.c.l.b16 %v178
    %v211 = vunpack.c.l.b16 %v179
    %v212 = vunpack.c.l.b16 %v180
    %v213 = vunpack.c.l.b16 %v181
    %v214 = vunpack.c.l.b16 %v182
    %v215 = vunpack.c.l.b16 %v183
    %v216 = vunpack.c.l.b16 %v184
    %v217 = vunpack.c.l.b16 %v185
    %v218 = vunpack.c.l.b16 %v186
    %v219 = vunpack.c.l.b16 %v187
    %v220 = vunpack.c.l.b16 %v188
    %v221 = vunpack.c.l.b16 %v189
    %v222 = vpack.c.b16 %v207, %v206
    %v223 = vpack.c.b16 %v209, %v208
    %v224 = vpack.c.b16 %v211, %v210
    %v225 = vpack.c.b16 %v213, %v212
    %v226 = vpack.c.b16 %v215, %v214
    %v227 = vpack.c.b16 %v217, %v216
    %v228 = vpack.c.b16 %v219, %v218
    %v229 = vpack.c.b16 %v221, %v220
    %238 = vmatpush.bf16.msra.mxu0 %v229
    %239 = vmatpush.bf16.msra.mxu0 %v228
    %240 = vmatpush.bf16.msra.mxu0 %v227
    %241 = vmatpush.bf16.msra.mxu0 %v226
    %242 = vmatpush.bf16.msra.mxu0 %v225
    %243 = vmatpush.bf16.msra.mxu0 %v224
    %244 = vmatpush.bf16.msra.mxu0 %v223
    %245 = vmatpush.bf16.msra.mxu0 %v222
    %246 = vmatmul.bf16.gmra.mxu0 %v173
    %v247 = vpop.f32.mrf.mxu0
    %v248 = vadd.f32 0.0, %v247
    %v249 = vpop.f32.mrf.mxu0
    %250 = vdwg.mxu0
    %v253 = vunpack.c.l.b16 %v107
    %v254 = vunpack.c.h.b16 %v107
    %v255 = vunpack.c.l.b16 %v108
    %v256 = vunpack.c.h.b16 %v108
    %v257 = vpack.c.b16 %v253, %v253
    %v258 = vpack.c.b16 %v254, %v254
    %v259 = vpack.c.b16 %v255, %v255
    %v260 = vpack.c.b16 %v256, %v256
    %v329 = vunpack.c.l.b16 %v109
    %v330 = vunpack.c.l.b16 %v110
    %v331 = vunpack.c.l.b16 %v111
    %v332 = vunpack.c.l.b16 %v112
    %v333 = vunpack.c.l.b16 %v113
    %v334 = vunpack.c.l.b16 %v114
    %v335 = vunpack.c.l.b16 %v115
    %v336 = vunpack.c.l.b16 %v116
    %v337 = vunpack.c.l.b16 %v117
    %v338 = vunpack.c.l.b16 %v118
    %v339 = vunpack.c.l.b16 %v119
    %v340 = vunpack.c.l.b16 %v120
    %v341 = vunpack.c.l.b16 %v121
    %v342 = vunpack.c.l.b16 %v122
    %v343 = vunpack.c.l.b16 %v123
    %v344 = vunpack.c.l.b16 %v124
    %v345 = vunpack.c.l.b16 %v125
    %v346 = vunpack.c.l.b16 %v126
    %v347 = vunpack.c.l.b16 %v127
    %v348 = vunpack.c.l.b16 %v128
    %v349 = vunpack.c.l.b16 %v129
    %v350 = vunpack.c.l.b16 %v130
    %v351 = vunpack.c.l.b16 %v131
    %v352 = vunpack.c.l.b16 %v132
    %v353 = vunpack.c.l.b16 %v133
    %v354 = vunpack.c.l.b16 %v134
    %v355 = vunpack.c.l.b16 %v135
    %v356 = vunpack.c.l.b16 %v136
    %v357 = vunpack.c.l.b16 %v137
    %v358 = vunpack.c.l.b16 %v138
    %v359 = vunpack.c.l.b16 %v139
    %v360 = vunpack.c.l.b16 %v140
    %v361 = vunpack.c.l.b16 %v141
    %v362 = vunpack.c.l.b16 %v142
    %v363 = vunpack.c.l.b16 %v143
    %v364 = vunpack.c.l.b16 %v144
    %v365 = vunpack.c.l.b16 %v145
    %v366 = vunpack.c.l.b16 %v146
    %v367 = vunpack.c.l.b16 %v147
    %v368 = vunpack.c.l.b16 %v148
    %v369 = vunpack.c.l.b16 %v149
    %v370 = vunpack.c.l.b16 %v150
    %v371 = vunpack.c.l.b16 %v151
    %v372 = vunpack.c.l.b16 %v152
    %v373 = vunpack.c.l.b16 %v153
    %v374 = vunpack.c.l.b16 %v154
    %v375 = vunpack.c.l.b16 %v155
    %v376 = vunpack.c.l.b16 %v156
    %v377 = vunpack.c.l.b16 %v157
    %v378 = vunpack.c.l.b16 %v158
    %v379 = vunpack.c.l.b16 %v159
    %v380 = vunpack.c.l.b16 %v160
    %v381 = vunpack.c.l.b16 %v161
    %v382 = vunpack.c.l.b16 %v162
    %v383 = vunpack.c.l.b16 %v163
    %v384 = vunpack.c.l.b16 %v164
    %v385 = vunpack.c.l.b16 %v165
    %v386 = vunpack.c.l.b16 %v166
    %v387 = vunpack.c.l.b16 %v167
    %v388 = vunpack.c.l.b16 %v168
    %v389 = vunpack.c.l.b16 %v169
    %v390 = vunpack.c.l.b16 %v170
    %v391 = vunpack.c.l.b16 %v171
    %v392 = vunpack.c.l.b16 %v172
    %v393 = vpack.c.b16 %v330, %v329
    %v394 = vpack.c.b16 %v332, %v331
    %v395 = vpack.c.b16 %v334, %v333
    %v396 = vpack.c.b16 %v336, %v335
    %v397 = vpack.c.b16 %v338, %v337
    %v398 = vpack.c.b16 %v340, %v339
    %v399 = vpack.c.b16 %v342, %v341
    %v400 = vpack.c.b16 %v344, %v343
    %v401 = vpack.c.b16 %v346, %v345
    %v402 = vpack.c.b16 %v348, %v347
    %v403 = vpack.c.b16 %v350, %v349
    %v404 = vpack.c.b16 %v352, %v351
    %v405 = vpack.c.b16 %v354, %v353
    %v406 = vpack.c.b16 %v356, %v355
    %v407 = vpack.c.b16 %v358, %v357
    %v408 = vpack.c.b16 %v360, %v359
    %v409 = vpack.c.b16 %v362, %v361
    %v410 = vpack.c.b16 %v364, %v363
    %v411 = vpack.c.b16 %v366, %v365
    %v412 = vpack.c.b16 %v368, %v367
    %v413 = vpack.c.b16 %v370, %v369
    %v414 = vpack.c.b16 %v372, %v371
    %v415 = vpack.c.b16 %v374, %v373
    %v416 = vpack.c.b16 %v376, %v375
    %v417 = vpack.c.b16 %v378, %v377
    %v418 = vpack.c.b16 %v380, %v379
    %v419 = vpack.c.b16 %v382, %v381
    %v420 = vpack.c.b16 %v384, %v383
    %v421 = vpack.c.b16 %v386, %v385
    %v422 = vpack.c.b16 %v388, %v387
    %v423 = vpack.c.b16 %v390, %v389
    %v424 = vpack.c.b16 %v392, %v391
    %457 = vmatpush.bf16.msra.mxu0 %v400
    %458 = vmatpush.bf16.msra.mxu0 %v399
    %459 = vmatpush.bf16.msra.mxu0 %v398
    %460 = vmatpush.bf16.msra.mxu0 %v397
    %461 = vmatpush.bf16.msra.mxu0 %v396
    %462 = vmatpush.bf16.msra.mxu0 %v395
    %463 = vmatpush.bf16.msra.mxu0 %v394
    %464 = vmatpush.bf16.msra.mxu0 %v393
    %465 = vmatmul.bf16.gmra.mxu0 %v257
    %v466 = vpop.f32.mrf.mxu0
    %v467 = vadd.f32 %v248, %v466
    %v468 = vpop.f32.mrf.mxu0
    %469 = vdwg.mxu0
    %470 = vmatpush.bf16.msra.mxu0 %v408
    %471 = vmatpush.bf16.msra.mxu0 %v407
    %472 = vmatpush.bf16.msra.mxu0 %v406
    %473 = vmatpush.bf16.msra.mxu0 %v405
    %474 = vmatpush.bf16.msra.mxu0 %v404
    %475 = vmatpush.bf16.msra.mxu0 %v403
    %476 = vmatpush.bf16.msra.mxu0 %v402
    %477 = vmatpush.bf16.msra.mxu0 %v401
    %478 = vmatmul.bf16.gmra.mxu0 %v258
    %v479 = vpop.f32.mrf.mxu0
    %v480 = vadd.f32 %v467, %v479
    %v481 = vpop.f32.mrf.mxu0
    %482 = vdwg.mxu0
    %483 = vmatpush.bf16.msra.mxu0 %v416
    %484 = vmatpush.bf16.msra.mxu0 %v415
    %485 = vmatpush.bf16.msra.mxu0 %v414
    %486 = vmatpush.bf16.msra.mxu0 %v413
    %487 = vmatpush.bf16.msra.mxu0 %v412
    %488 = vmatpush.bf16.msra.mxu0 %v411
    %489 = vmatpush.bf16.msra.mxu0 %v410
    %490 = vmatpush.bf16.msra.mxu0 %v409
    %491 = vmatmul.bf16.gmra.mxu0 %v259
    %v492 = vpop.f32.mrf.mxu0
    %v493 = vadd.f32 %v480, %v492
    %v494 = vpop.f32.mrf.mxu0
    %495 = vdwg.mxu0
    %496 = vmatpush.bf16.msra.mxu0 %v424
    %497 = vmatpush.bf16.msra.mxu0 %v423
    %498 = vmatpush.bf16.msra.mxu0 %v422
    %499 = vmatpush.bf16.msra.mxu0 %v421
    %500 = vmatpush.bf16.msra.mxu0 %v420
    %501 = vmatpush.bf16.msra.mxu0 %v419
    %502 = vmatpush.bf16.msra.mxu0 %v418
    %503 = vmatpush.bf16.msra.mxu0 %v417
    %504 = vmatmul.bf16.gmra.mxu0 %v260
    %v505 = vpop.f32.mrf.mxu0
    %v506 = vadd.f32 %v493, %v505
    %v507 = vpop.f32.mrf.mxu0
    %508 = vdwg.mxu0
    %v509 = vld [vmem:[%s2] sm:$0xff]
    %v510 = vld [vmem:[%s2 + $0x8] sm:$0xff]
    %v511 = vld [vmem:[%s2 + $0x10] sm:$0xff]
    %v512 = vld [vmem:[%s2 + $0x18] sm:$0xff]
    %v513 = vld [vmem:[%s2 + $0x20] sm:$0xff]
    %v514 = vld [vmem:[%s2 + $0x28] sm:$0xff]
    %v515 = vld [vmem:[%s2 + $0x30] sm:$0xff]
    %v516 = vld [vmem:[%s2 + $0x38] sm:$0xff]
    %v517 = vld [vmem:[%s2 + $0x40] sm:$0xff]
    %v518 = vld [vmem:[#allocation4] sm:$0xf]
    %v519 = vld [vmem:[#allocation4 + $0x4] sm:$0xf]
    %v520 = vld [vmem:[#allocation4 + $0x8] sm:$0xf]
    %v521 = vld [vmem:[#allocation4 + $0xc] sm:$0xf]
    %v522 = vld [vmem:[#allocation4 + $0x10] sm:$0xf]
    %v523 = vld [vmem:[#allocation4 + $0x14] sm:$0xf]
    %v524 = vld [vmem:[#allocation4 + $0x18] sm:$0xf]
    %v525 = vld [vmem:[#allocation4 + $0x1c] sm:$0xf]
    %v526 = vld [vmem:[#allocation4 + $0x20] sm:$0xf]
    %v527 = vld [vmem:[#allocation4 + $0x24] sm:$0xf]
    %v528 = vld [vmem:[#allocation4 + $0x28] sm:$0xf]
    %v529 = vld [vmem:[#allocation4 + $0x2c] sm:$0xf]
    %v530 = vld [vmem:[#allocation4 + $0x30] sm:$0xf]
    %v531 = vld [vmem:[#allocation4 + $0x34] sm:$0xf]
    %v532 = vld [vmem:[#allocation4 + $0x38] sm:$0xf]
    %v533 = vld [vmem:[#allocation4 + $0x3c] sm:$0xf]
    %v534 = vld [vmem:[#allocation4 + $0x40] sm:$0xf]
    %v535 = vld [vmem:[#allocation4 + $0x44] sm:$0xf]
    %v536 = vld [vmem:[#allocation4 + $0x48] sm:$0xf]
    %v537 = vld [vmem:[#allocation4 + $0x4c] sm:$0xf]
    %v538 = vld [vmem:[#allocation4 + $0x50] sm:$0xf]
    %v539 = vld [vmem:[#allocation4 + $0x54] sm:$0xf]
    %v540 = vld [vmem:[#allocation4 + $0x58] sm:$0xf]
    %v541 = vld [vmem:[#allocation4 + $0x5c] sm:$0xf]
    %v542 = vld [vmem:[#allocation4 + $0x60] sm:$0xf]
    %v543 = vld [vmem:[#allocation4 + $0x64] sm:$0xf]
    %v544 = vld [vmem:[#allocation4 + $0x68] sm:$0xf]
    %v545 = vld [vmem:[#allocation4 + $0x6c] sm:$0xf]
    %v546 = vld [vmem:[#allocation4 + $0x70] sm:$0xf]
    %v547 = vld [vmem:[#allocation4 + $0x74] sm:$0xf]
    %v548 = vld [vmem:[#allocation4 + $0x78] sm:$0xf]
    %v549 = vld [vmem:[#allocation4 + $0x7c] sm:$0xf]
    %v550 = vld [vmem:[#allocation4 + $0x80] sm:$0xf]
    %v551 = vld [vmem:[#allocation4 + $0x84] sm:$0xf]
    %v552 = vld [vmem:[#allocation4 + $0x88] sm:$0xf]
    %v553 = vld [vmem:[#allocation4 + $0x8c] sm:$0xf]
    %v554 = vld [vmem:[#allocation4 + $0x90] sm:$0xf]
    %v555 = vld [vmem:[#allocation4 + $0x94] sm:$0xf]
    %v556 = vld [vmem:[#allocation4 + $0x98] sm:$0xf]
    %v557 = vld [vmem:[#allocation4 + $0x9c] sm:$0xf]
    %v558 = vld [vmem:[#allocation4 + $0xa0] sm:$0xf]
    %v559 = vld [vmem:[#allocation4 + $0xa4] sm:$0xf]
    %v560 = vld [vmem:[#allocation4 + $0xa8] sm:$0xf]
    %v561 = vld [vmem:[#allocation4 + $0xac] sm:$0xf]
    %v562 = vld [vmem:[#allocation4 + $0xb0] sm:$0xf]
    %v563 = vld [vmem:[#allocation4 + $0xb4] sm:$0xf]
    %v564 = vld [vmem:[#allocation4 + $0xb8] sm:$0xf]
    %v565 = vld [vmem:[#allocation4 + $0xbc] sm:$0xf]
    %v566 = vld [vmem:[#allocation4 + $0xc0] sm:$0xf]
    %v567 = vld [vmem:[#allocation4 + $0xc4] sm:$0xf]
    %v568 = vld [vmem:[#allocation4 + $0xc8] sm:$0xf]
    %v569 = vld [vmem:[#allocation4 + $0xcc] sm:$0xf]
    %v570 = vld [vmem:[#allocation4 + $0xd0] sm:$0xf]
    %v571 = vld [vmem:[#allocation4 + $0xd4] sm:$0xf]
    %v572 = vld [vmem:[#allocation4 + $0xd8] sm:$0xf]
    %v573 = vld [vmem:[#allocation4 + $0xdc] sm:$0xf]
    %v574 = vld [vmem:[#allocation4 + $0xe0] sm:$0xf]
    %v575 = vld [vmem:[#allocation4 + $0xe4] sm:$0xf]
    %v576 = vld [vmem:[#allocation4 + $0xe8] sm:$0xf]
    %v577 = vld [vmem:[#allocation4 + $0xec] sm:$0xf]
    %v578 = vld [vmem:[#allocation4 + $0xf0] sm:$0xf]
    %v579 = vld [vmem:[#allocation4 + $0xf4] sm:$0xf]
    %v580 = vld [vmem:[#allocation4 + $0xf8] sm:$0xf]
    %v581 = vld [vmem:[#allocation4 + $0xfc] sm:$0xf]
    %v582 = vld [vmem:[#allocation4 + $0x100] sm:$0xf]
    %v583 = vld [vmem:[#allocation4 + $0x104] sm:$0xf]
    %v584 = vld [vmem:[#allocation4 + $0x108] sm:$0xf]
    %v585 = vld [vmem:[#allocation4 + $0x10c] sm:$0xf]
    %v586 = vld [vmem:[#allocation4 + $0x110] sm:$0xf]
    %v587 = vld [vmem:[#allocation4 + $0x114] sm:$0xf]
    %v588 = vld [vmem:[#allocation4 + $0x118] sm:$0xf]
    %v589 = vld [vmem:[#allocation4 + $0x11c] sm:$0xf]
    %v590 = vld [vmem:[#allocation4 + $0x120] sm:$0xf]
    %v591 = vld [vmem:[#allocation4 + $0x124] sm:$0xf]
    %v592 = vld [vmem:[#allocation4 + $0x128] sm:$0xf]
    %v593 = vld [vmem:[#allocation4 + $0x12c] sm:$0xf]
    %v594 = vld [vmem:[#allocation4 + $0x130] sm:$0xf]
    %v595 = vld [vmem:[#allocation4 + $0x134] sm:$0xf]
    %v596 = vld [vmem:[#allocation4 + $0x138] sm:$0xf]
    %v597 = vld [vmem:[#allocation4 + $0x13c] sm:$0xf]
    %v598 = vld [vmem:[#allocation4 + $0x140] sm:$0xf]
    %v599 = vld [vmem:[#allocation4 + $0x144] sm:$0xf]
    %v600 = vld [vmem:[#allocation4 + $0x148] sm:$0xf]
    %v601 = vld [vmem:[#allocation4 + $0x14c] sm:$0xf]
    %v602 = vld [vmem:[#allocation4 + $0x150] sm:$0xf]
    %v603 = vld [vmem:[#allocation4 + $0x154] sm:$0xf]
    %v604 = vld [vmem:[#allocation4 + $0x158] sm:$0xf]
    %v605 = vld [vmem:[#allocation4 + $0x15c] sm:$0xf]
    %v606 = vld [vmem:[#allocation4 + $0x160] sm:$0xf]
    %v607 = vld [vmem:[#allocation4 + $0x164] sm:$0xf]
    %v608 = vld [vmem:[#allocation4 + $0x168] sm:$0xf]
    %v609 = vld [vmem:[#allocation4 + $0x16c] sm:$0xf]
    %v610 = vld [vmem:[#allocation4 + $0x170] sm:$0xf]
    %v611 = vld [vmem:[#allocation4 + $0x174] sm:$0xf]
    %v612 = vld [vmem:[#allocation4 + $0x178] sm:$0xf]
    %v613 = vld [vmem:[#allocation4 + $0x17c] sm:$0xf]
    %v614 = vld [vmem:[#allocation4 + $0x180] sm:$0xf]
    %v615 = vld [vmem:[#allocation4 + $0x184] sm:$0xf]
    %v616 = vld [vmem:[#allocation4 + $0x188] sm:$0xf]
    %v617 = vld [vmem:[#allocation4 + $0x18c] sm:$0xf]
    %v618 = vld [vmem:[#allocation4 + $0x190] sm:$0xf]
    %v619 = vld [vmem:[#allocation4 + $0x194] sm:$0xf]
    %v620 = vld [vmem:[#allocation4 + $0x198] sm:$0xf]
    %v621 = vld [vmem:[#allocation4 + $0x19c] sm:$0xf]
    %v622 = vld [vmem:[#allocation4 + $0x1a0] sm:$0xf]
    %v623 = vld [vmem:[#allocation4 + $0x1a4] sm:$0xf]
    %v624 = vld [vmem:[#allocation4 + $0x1a8] sm:$0xf]
    %v625 = vld [vmem:[#allocation4 + $0x1ac] sm:$0xf]
    %v626 = vld [vmem:[#allocation4 + $0x1b0] sm:$0xf]
    %v627 = vld [vmem:[#allocation4 + $0x1b4] sm:$0xf]
    %v628 = vld [vmem:[#allocation4 + $0x1b8] sm:$0xf]
    %v629 = vld [vmem:[#allocation4 + $0x1bc] sm:$0xf]
    %v630 = vld [vmem:[#allocation4 + $0x1c0] sm:$0xf]
    %v631 = vld [vmem:[#allocation4 + $0x1c4] sm:$0xf]
    %v632 = vld [vmem:[#allocation4 + $0x1c8] sm:$0xf]
    %v633 = vld [vmem:[#allocation4 + $0x1cc] sm:$0xf]
    %v634 = vld [vmem:[#allocation4 + $0x1d0] sm:$0xf]
    %v635 = vld [vmem:[#allocation4 + $0x1d4] sm:$0xf]
    %v636 = vld [vmem:[#allocation4 + $0x1d8] sm:$0xf]
    %v637 = vld [vmem:[#allocation4 + $0x1dc] sm:$0xf]
    %v638 = vld [vmem:[#allocation4 + $0x1e0] sm:$0xf]
    %v639 = vld [vmem:[#allocation4 + $0x1e4] sm:$0xf]
    %v640 = vld [vmem:[#allocation4 + $0x1e8] sm:$0xf]
    %v641 = vld [vmem:[#allocation4 + $0x1ec] sm:$0xf]
    %v642 = vld [vmem:[#allocation4 + $0x1f0] sm:$0xf]
    %v643 = vld [vmem:[#allocation4 + $0x1f4] sm:$0xf]
    %v644 = vld [vmem:[#allocation4 + $0x1f8] sm:$0xf]
    %v645 = vld [vmem:[#allocation4 + $0x1fc] sm:$0xf]
    %v646 = vld [vmem:[#allocation4 + $0x200] sm:$0xf]
    %v647 = vld [vmem:[#allocation4 + $0x204] sm:$0xf]
    %v648 = vld [vmem:[#allocation4 + $0x208] sm:$0xf]
    %v649 = vld [vmem:[#allocation4 + $0x20c] sm:$0xf]
    %v650 = vld [vmem:[#allocation4 + $0x210] sm:$0xf]
    %v651 = vld [vmem:[#allocation4 + $0x214] sm:$0xf]
    %v652 = vld [vmem:[#allocation4 + $0x218] sm:$0xf]
    %v653 = vld [vmem:[#allocation4 + $0x21c] sm:$0xf]
    %v654 = vld [vmem:[#allocation4 + $0x220] sm:$0xf]
    %v655 = vld [vmem:[#allocation4 + $0x224] sm:$0xf]
    %v656 = vld [vmem:[#allocation4 + $0x228] sm:$0xf]
    %v657 = vld [vmem:[#allocation4 + $0x22c] sm:$0xf]
    %v658 = vld [vmem:[#allocation4 + $0x230] sm:$0xf]
    %v659 = vld [vmem:[#allocation4 + $0x234] sm:$0xf]
    %v660 = vld [vmem:[#allocation4 + $0x238] sm:$0xf]
    %v661 = vld [vmem:[#allocation4 + $0x23c] sm:$0xf]
    %v662 = vld [vmem:[#allocation4 + $0x240] sm:$0xf]
    %v663 = vld [vmem:[#allocation4 + $0x244] sm:$0xf]
    %v664 = vld [vmem:[#allocation4 + $0x248] sm:$0xf]
    %v665 = vld [vmem:[#allocation4 + $0x24c] sm:$0xf]
    %v666 = vld [vmem:[#allocation4 + $0x250] sm:$0xf]
    %v667 = vld [vmem:[#allocation4 + $0x254] sm:$0xf]
    %v668 = vld [vmem:[#allocation4 + $0x258] sm:$0xf]
    %v669 = vld [vmem:[#allocation4 + $0x25c] sm:$0xf]
    %v670 = vld [vmem:[#allocation4 + $0x260] sm:$0xf]
    %v671 = vld [vmem:[#allocation4 + $0x264] sm:$0xf]
    %v672 = vld [vmem:[#allocation4 + $0x268] sm:$0xf]
    %v673 = vld [vmem:[#allocation4 + $0x26c] sm:$0xf]
    %v674 = vld [vmem:[#allocation4 + $0x270] sm:$0xf]
    %v675 = vld [vmem:[#allocation4 + $0x274] sm:$0xf]
    %v676 = vld [vmem:[#allocation4 + $0x278] sm:$0xf]
    %v677 = vld [vmem:[#allocation4 + $0x27c] sm:$0xf]
    %v678 = vld [vmem:[#allocation4 + $0x280] sm:$0xf]
    %v679 = vld [vmem:[#allocation4 + $0x284] sm:$0xf]
    %v680 = vld [vmem:[#allocation4 + $0x288] sm:$0xf]
    %v681 = vld [vmem:[#allocation4 + $0x28c] sm:$0xf]
    %v682 = vld [vmem:[#allocation4 + $0x290] sm:$0xf]
    %v683 = vld [vmem:[#allocation4 + $0x294] sm:$0xf]
    %v684 = vld [vmem:[#allocation4 + $0x298] sm:$0xf]
    %v685 = vld [vmem:[#allocation4 + $0x29c] sm:$0xf]
    %v686 = vld [vmem:[#allocation4 + $0x2a0] sm:$0xf]
    %v687 = vld [vmem:[#allocation4 + $0x2a4] sm:$0xf]
    %v688 = vld [vmem:[#allocation4 + $0x2a8] sm:$0xf]
    %v689 = vld [vmem:[#allocation4 + $0x2ac] sm:$0xf]
    %v690 = vld [vmem:[#allocation4 + $0x2b0] sm:$0xf]
    %v691 = vld [vmem:[#allocation4 + $0x2b4] sm:$0xf]
    %v692 = vld [vmem:[#allocation4 + $0x2b8] sm:$0xf]
    %v693 = vld [vmem:[#allocation4 + $0x2bc] sm:$0xf]
    %v694 = vld [vmem:[#allocation4 + $0x2c0] sm:$0xf]
    %v695 = vld [vmem:[#allocation4 + $0x2c4] sm:$0xf]
    %v696 = vld [vmem:[#allocation4 + $0x2c8] sm:$0xf]
    %v697 = vld [vmem:[#allocation4 + $0x2cc] sm:$0xf]
    %v698 = vld [vmem:[#allocation4 + $0x2d0] sm:$0xf]
    %v699 = vld [vmem:[#allocation4 + $0x2d4] sm:$0xf]
    %v700 = vld [vmem:[#allocation4 + $0x2d8] sm:$0xf]
    %v701 = vld [vmem:[#allocation4 + $0x2dc] sm:$0xf]
    %v702 = vld [vmem:[#allocation4 + $0x2e0] sm:$0xf]
    %v703 = vld [vmem:[#allocation4 + $0x2e4] sm:$0xf]
    %v704 = vld [vmem:[#allocation4 + $0x2e8] sm:$0xf]
    %v705 = vld [vmem:[#allocation4 + $0x2ec] sm:$0xf]
    %v706 = vld [vmem:[#allocation4 + $0x2f0] sm:$0xf]
    %v707 = vld [vmem:[#allocation4 + $0x2f4] sm:$0xf]
    %v708 = vld [vmem:[#allocation4 + $0x2f8] sm:$0xf]
    %v709 = vld [vmem:[#allocation4 + $0x2fc] sm:$0xf]
    %v710 = vld [vmem:[#allocation4 + $0x300] sm:$0xf]
    %v711 = vld [vmem:[#allocation4 + $0x304] sm:$0xf]
    %v712 = vld [vmem:[#allocation4 + $0x308] sm:$0xf]
    %v713 = vld [vmem:[#allocation4 + $0x30c] sm:$0xf]
    %v714 = vld [vmem:[#allocation4 + $0x310] sm:$0xf]
    %v715 = vld [vmem:[#allocation4 + $0x314] sm:$0xf]
    %v716 = vld [vmem:[#allocation4 + $0x318] sm:$0xf]
    %v717 = vld [vmem:[#allocation4 + $0x31c] sm:$0xf]
    %v718 = vld [vmem:[#allocation4 + $0x320] sm:$0xf]
    %v719 = vld [vmem:[#allocation4 + $0x324] sm:$0xf]
    %v720 = vld [vmem:[#allocation4 + $0x328] sm:$0xf]
    %v721 = vld [vmem:[#allocation4 + $0x32c] sm:$0xf]
    %v722 = vld [vmem:[#allocation4 + $0x330] sm:$0xf]
    %v723 = vld [vmem:[#allocation4 + $0x334] sm:$0xf]
    %v724 = vld [vmem:[#allocation4 + $0x338] sm:$0xf]
    %v725 = vld [vmem:[#allocation4 + $0x33c] sm:$0xf]
    %v726 = vld [vmem:[#allocation4 + $0x340] sm:$0xf]
    %v727 = vld [vmem:[#allocation4 + $0x344] sm:$0xf]
    %v728 = vld [vmem:[#allocation4 + $0x348] sm:$0xf]
    %v729 = vld [vmem:[#allocation4 + $0x34c] sm:$0xf]
    %v730 = vld [vmem:[#allocation4 + $0x350] sm:$0xf]
    %v731 = vld [vmem:[#allocation4 + $0x354] sm:$0xf]
    %v732 = vld [vmem:[#allocation4 + $0x358] sm:$0xf]
    %v733 = vld [vmem:[#allocation4 + $0x35c] sm:$0xf]
    %v734 = vld [vmem:[#allocation4 + $0x360] sm:$0xf]
    %v735 = vld [vmem:[#allocation4 + $0x364] sm:$0xf]
    %v736 = vld [vmem:[#allocation4 + $0x368] sm:$0xf]
    %v737 = vld [vmem:[#allocation4 + $0x36c] sm:$0xf]
    %v738 = vld [vmem:[#allocation4 + $0x370] sm:$0xf]
    %v739 = vld [vmem:[#allocation4 + $0x374] sm:$0xf]
    %v740 = vld [vmem:[#allocation4 + $0x378] sm:$0xf]
    %v741 = vld [vmem:[#allocation4 + $0x37c] sm:$0xf]
    %v742 = vld [vmem:[#allocation4 + $0x380] sm:$0xf]
    %v743 = vld [vmem:[#allocation4 + $0x384] sm:$0xf]
    %v744 = vld [vmem:[#allocation4 + $0x388] sm:$0xf]
    %v745 = vld [vmem:[#allocation4 + $0x38c] sm:$0xf]
    %v746 = vld [vmem:[#allocation4 + $0x390] sm:$0xf]
    %v747 = vld [vmem:[#allocation4 + $0x394] sm:$0xf]
    %v748 = vld [vmem:[#allocation4 + $0x398] sm:$0xf]
    %v749 = vld [vmem:[#allocation4 + $0x39c] sm:$0xf]
    %v750 = vld [vmem:[#allocation4 + $0x3a0] sm:$0xf]
    %v751 = vld [vmem:[#allocation4 + $0x3a4] sm:$0xf]
    %v752 = vld [vmem:[#allocation4 + $0x3a8] sm:$0xf]
    %v753 = vld [vmem:[#allocation4 + $0x3ac] sm:$0xf]
    %v754 = vld [vmem:[#allocation4 + $0x3b0] sm:$0xf]
    %v755 = vld [vmem:[#allocation4 + $0x3b4] sm:$0xf]
    %v756 = vld [vmem:[#allocation4 + $0x3b8] sm:$0xf]
    %v757 = vld [vmem:[#allocation4 + $0x3bc] sm:$0xf]
    %v758 = vld [vmem:[#allocation4 + $0x3c0] sm:$0xf]
    %v759 = vld [vmem:[#allocation4 + $0x3c4] sm:$0xf]
    %v760 = vld [vmem:[#allocation4 + $0x3c8] sm:$0xf]
    %v761 = vld [vmem:[#allocation4 + $0x3cc] sm:$0xf]
    %v762 = vld [vmem:[#allocation4 + $0x3d0] sm:$0xf]
    %v763 = vld [vmem:[#allocation4 + $0x3d4] sm:$0xf]
    %v764 = vld [vmem:[#allocation4 + $0x3d8] sm:$0xf]
    %v765 = vld [vmem:[#allocation4 + $0x3dc] sm:$0xf]
    %v766 = vld [vmem:[#allocation4 + $0x3e0] sm:$0xf]
    %v767 = vld [vmem:[#allocation4 + $0x3e4] sm:$0xf]
    %v768 = vld [vmem:[#allocation4 + $0x3e8] sm:$0xf]
    %v769 = vld [vmem:[#allocation4 + $0x3ec] sm:$0xf]
    %v770 = vld [vmem:[#allocation4 + $0x3f0] sm:$0xf]
    %v771 = vld [vmem:[#allocation4 + $0x3f4] sm:$0xf]
    %v772 = vld [vmem:[#allocation4 + $0x3f8] sm:$0xf]
    %v773 = vld [vmem:[#allocation4 + $0x3fc] sm:$0xf]
    %v774 = vld [vmem:[#allocation4 + $0x400] sm:$0xf]
    %v775 = vld [vmem:[#allocation4 + $0x404] sm:$0xf]
    %v776 = vld [vmem:[#allocation4 + $0x408] sm:$0xf]
    %v777 = vld [vmem:[#allocation4 + $0x40c] sm:$0xf]
    %v778 = vld [vmem:[#allocation4 + $0x410] sm:$0xf]
    %v779 = vld [vmem:[#allocation4 + $0x414] sm:$0xf]
    %v780 = vld [vmem:[#allocation4 + $0x418] sm:$0xf]
    %v781 = vld [vmem:[#allocation4 + $0x41c] sm:$0xf]
    %v782 = vld [vmem:[#allocation4 + $0x420] sm:$0xf]
    %v783 = vld [vmem:[#allocation4 + $0x424] sm:$0xf]
    %v784 = vld [vmem:[#allocation4 + $0x428] sm:$0xf]
    %v785 = vld [vmem:[#allocation4 + $0x42c] sm:$0xf]
    %v786 = vld [vmem:[#allocation4 + $0x430] sm:$0xf]
    %v787 = vld [vmem:[#allocation4 + $0x434] sm:$0xf]
    %v788 = vld [vmem:[#allocation4 + $0x438] sm:$0xf]
    %v789 = vld [vmem:[#allocation4 + $0x43c] sm:$0xf]
    %v790 = vld [vmem:[#allocation4 + $0x440] sm:$0xf]
    %v791 = vld [vmem:[#allocation4 + $0x444] sm:$0xf]
    %v792 = vld [vmem:[#allocation4 + $0x448] sm:$0xf]
    %v793 = vld [vmem:[#allocation4 + $0x44c] sm:$0xf]
    %v794 = vld [vmem:[#allocation4 + $0x450] sm:$0xf]
    %v795 = vld [vmem:[#allocation4 + $0x454] sm:$0xf]
    %v796 = vld [vmem:[#allocation4 + $0x458] sm:$0xf]
    %v797 = vld [vmem:[#allocation4 + $0x45c] sm:$0xf]
    %v798 = vld [vmem:[#allocation4 + $0x460] sm:$0xf]
    %v799 = vld [vmem:[#allocation4 + $0x464] sm:$0xf]
    %v800 = vld [vmem:[#allocation4 + $0x468] sm:$0xf]
    %v801 = vld [vmem:[#allocation4 + $0x46c] sm:$0xf]
    %v802 = vld [vmem:[#allocation4 + $0x470] sm:$0xf]
    %v803 = vld [vmem:[#allocation4 + $0x474] sm:$0xf]
    %v804 = vld [vmem:[#allocation4 + $0x478] sm:$0xf]
    %v805 = vld [vmem:[#allocation4 + $0x47c] sm:$0xf]
    %v815 = vunpack.c.l.b16 %v509
    %v816 = vunpack.c.h.b16 %v509
    %v817 = vunpack.c.l.b16 %v510
    %v818 = vunpack.c.h.b16 %v510
    %v819 = vunpack.c.l.b16 %v511
    %v820 = vunpack.c.h.b16 %v511
    %v821 = vunpack.c.l.b16 %v512
    %v822 = vunpack.c.h.b16 %v512
    %v823 = vunpack.c.l.b16 %v513
    %v824 = vunpack.c.h.b16 %v513
    %v825 = vunpack.c.l.b16 %v514
    %v826 = vunpack.c.h.b16 %v514
    %v827 = vunpack.c.l.b16 %v515
    %v828 = vunpack.c.h.b16 %v515
    %v829 = vunpack.c.l.b16 %v516
    %v830 = vunpack.c.h.b16 %v516
    %v831 = vunpack.c.l.b16 %v517
    %v832 = vunpack.c.h.b16 %v517
    %v833 = vpack.c.b16 %v815, %v815
    %v834 = vpack.c.b16 %v816, %v816
    %v835 = vpack.c.b16 %v817, %v817
    %v836 = vpack.c.b16 %v818, %v818
    %v837 = vpack.c.b16 %v819, %v819
    %v838 = vpack.c.b16 %v820, %v820
    %v839 = vpack.c.b16 %v821, %v821
    %v840 = vpack.c.b16 %v822, %v822
    %v841 = vpack.c.b16 %v823, %v823
    %v842 = vpack.c.b16 %v824, %v824
    %v843 = vpack.c.b16 %v825, %v825
    %v844 = vpack.c.b16 %v826, %v826
    %v845 = vpack.c.b16 %v827, %v827
    %v846 = vpack.c.b16 %v828, %v828
    %v847 = vpack.c.b16 %v829, %v829
    %v848 = vpack.c.b16 %v830, %v830
    %v849 = vpack.c.b16 %v831, %v831
    %v850 = vpack.c.b16 %v832, %v832
    %v1157 = vunpack.c.l.b16 %v518
    %v1158 = vunpack.c.l.b16 %v519
    %v1159 = vunpack.c.l.b16 %v520
    %v1160 = vunpack.c.l.b16 %v521
    %v1161 = vunpack.c.l.b16 %v522
    %v1162 = vunpack.c.l.b16 %v523
    %v1163 = vunpack.c.l.b16 %v524
    %v1164 = vunpack.c.l.b16 %v525
    %v1165 = vunpack.c.l.b16 %v526
    %v1166 = vunpack.c.l.b16 %v527
    %v1167 = vunpack.c.l.b16 %v528
    %v1168 = vunpack.c.l.b16 %v529
    %v1169 = vunpack.c.l.b16 %v530
    %v1170 = vunpack.c.l.b16 %v531
    %v1171 = vunpack.c.l.b16 %v532
    %v1172 = vunpack.c.l.b16 %v533
    %v1173 = vunpack.c.l.b16 %v534
    %v1174 = vunpack.c.l.b16 %v535
    %v1175 = vunpack.c.l.b16 %v536
    %v1176 = vunpack.c.l.b16 %v537
    %v1177 = vunpack.c.l.b16 %v538
    %v1178 = vunpack.c.l.b16 %v539
    %v1179 = vunpack.c.l.b16 %v540
    %v1180 = vunpack.c.l.b16 %v541
    %v1181 = vunpack.c.l.b16 %v542
    %v1182 = vunpack.c.l.b16 %v543
    %v1183 = vunpack.c.l.b16 %v544
    %v1184 = vunpack.c.l.b16 %v545
    %v1185 = vunpack.c.l.b16 %v546
    %v1186 = vunpack.c.l.b16 %v547
    %v1187 = vunpack.c.l.b16 %v548
    %v1188 = vunpack.c.l.b16 %v549
    %v1189 = vunpack.c.l.b16 %v550
    %v1190 = vunpack.c.l.b16 %v551
    %v1191 = vunpack.c.l.b16 %v552
    %v1192 = vunpack.c.l.b16 %v553
    %v1193 = vunpack.c.l.b16 %v554
    %v1194 = vunpack.c.l.b16 %v555
    %v1195 = vunpack.c.l.b16 %v556
    %v1196 = vunpack.c.l.b16 %v557
    %v1197 = vunpack.c.l.b16 %v558
    %v1198 = vunpack.c.l.b16 %v559
    %v1199 = vunpack.c.l.b16 %v560
    %v1200 = vunpack.c.l.b16 %v561
    %v1201 = vunpack.c.l.b16 %v562
    %v1202 = vunpack.c.l.b16 %v563
    %v1203 = vunpack.c.l.b16 %v564
    %v1204 = vunpack.c.l.b16 %v565
    %v1205 = vunpack.c.l.b16 %v566
    %v1206 = vunpack.c.l.b16 %v567
    %v1207 = vunpack.c.l.b16 %v568
    %v1208 = vunpack.c.l.b16 %v569
    %v1209 = vunpack.c.l.b16 %v570
    %v1210 = vunpack.c.l.b16 %v571
    %v1211 = vunpack.c.l.b16 %v572
    %v1212 = vunpack.c.l.b16 %v573
    %v1213 = vunpack.c.l.b16 %v574
    %v1214 = vunpack.c.l.b16 %v575
    %v1215 = vunpack.c.l.b16 %v576
    %v1216 = vunpack.c.l.b16 %v577
    %v1217 = vunpack.c.l.b16 %v578
    %v1218 = vunpack.c.l.b16 %v579
    %v1219 = vunpack.c.l.b16 %v580
    %v1220 = vunpack.c.l.b16 %v581
    %v1221 = vunpack.c.l.b16 %v582
    %v1222 = vunpack.c.l.b16 %v583
    %v1223 = vunpack.c.l.b16 %v584
    %v1224 = vunpack.c.l.b16 %v585
    %v1225 = vunpack.c.l.b16 %v586
    %v1226 = vunpack.c.l.b16 %v587
    %v1227 = vunpack.c.l.b16 %v588
    %v1228 = vunpack.c.l.b16 %v589
    %v1229 = vunpack.c.l.b16 %v590
    %v1230 = vunpack.c.l.b16 %v591
    %v1231 = vunpack.c.l.b16 %v592
    %v1232 = vunpack.c.l.b16 %v593
    %v1233 = vunpack.c.l.b16 %v594
    %v1234 = vunpack.c.l.b16 %v595
    %v1235 = vunpack.c.l.b16 %v596
    %v1236 = vunpack.c.l.b16 %v597
    %v1237 = vunpack.c.l.b16 %v598
    %v1238 = vunpack.c.l.b16 %v599
    %v1239 = vunpack.c.l.b16 %v600
    %v1240 = vunpack.c.l.b16 %v601
    %v1241 = vunpack.c.l.b16 %v602
    %v1242 = vunpack.c.l.b16 %v603
    %v1243 = vunpack.c.l.b16 %v604
    %v1244 = vunpack.c.l.b16 %v605
    %v1245 = vunpack.c.l.b16 %v606
    %v1246 = vunpack.c.l.b16 %v607
    %v1247 = vunpack.c.l.b16 %v608
    %v1248 = vunpack.c.l.b16 %v609
    %v1249 = vunpack.c.l.b16 %v610
    %v1250 = vunpack.c.l.b16 %v611
    %v1251 = vunpack.c.l.b16 %v612
    %v1252 = vunpack.c.l.b16 %v613
    %v1253 = vunpack.c.l.b16 %v614
    %v1254 = vunpack.c.l.b16 %v615
    %v1255 = vunpack.c.l.b16 %v616
    %v1256 = vunpack.c.l.b16 %v617
    %v1257 = vunpack.c.l.b16 %v618
    %v1258 = vunpack.c.l.b16 %v619
    %v1259 = vunpack.c.l.b16 %v620
    %v1260 = vunpack.c.l.b16 %v621
    %v1261 = vunpack.c.l.b16 %v622
    %v1262 = vunpack.c.l.b16 %v623
    %v1263 = vunpack.c.l.b16 %v624
    %v1264 = vunpack.c.l.b16 %v625
    %v1265 = vunpack.c.l.b16 %v626
    %v1266 = vunpack.c.l.b16 %v627
    %v1267 = vunpack.c.l.b16 %v628
    %v1268 = vunpack.c.l.b16 %v629
    %v1269 = vunpack.c.l.b16 %v630
    %v1270 = vunpack.c.l.b16 %v631
    %v1271 = vunpack.c.l.b16 %v632
    %v1272 = vunpack.c.l.b16 %v633
    %v1273 = vunpack.c.l.b16 %v634
    %v1274 = vunpack.c.l.b16 %v635
    %v1275 = vunpack.c.l.b16 %v636
    %v1276 = vunpack.c.l.b16 %v637
    %v1277 = vunpack.c.l.b16 %v638
    %v1278 = vunpack.c.l.b16 %v639
    %v1279 = vunpack.c.l.b16 %v640
    %v1280 = vunpack.c.l.b16 %v641
    %v1281 = vunpack.c.l.b16 %v642
    %v1282 = vunpack.c.l.b16 %v643
    %v1283 = vunpack.c.l.b16 %v644
    %v1284 = vunpack.c.l.b16 %v645
    %v1285 = vunpack.c.l.b16 %v646
    %v1286 = vunpack.c.l.b16 %v647
    %v1287 = vunpack.c.l.b16 %v648
    %v1288 = vunpack.c.l.b16 %v649
    %v1289 = vunpack.c.l.b16 %v650
    %v1290 = vunpack.c.l.b16 %v651
    %v1291 = vunpack.c.l.b16 %v652
    %v1292 = vunpack.c.l.b16 %v653
    %v1293 = vunpack.c.l.b16 %v654
    %v1294 = vunpack.c.l.b16 %v655
    %v1295 = vunpack.c.l.b16 %v656
    %v1296 = vunpack.c.l.b16 %v657
    %v1297 = vunpack.c.l.b16 %v658
    %v1298 = vunpack.c.l.b16 %v659
    %v1299 = vunpack.c.l.b16 %v660
    %v1300 = vunpack.c.l.b16 %v661
    %v1301 = vunpack.c.l.b16 %v662
    %v1302 = vunpack.c.l.b16 %v663
    %v1303 = vunpack.c.l.b16 %v664
    %v1304 = vunpack.c.l.b16 %v665
    %v1305 = vunpack.c.l.b16 %v666
    %v1306 = vunpack.c.l.b16 %v667
    %v1307 = vunpack.c.l.b16 %v668
    %v1308 = vunpack.c.l.b16 %v669
    %v1309 = vunpack.c.l.b16 %v670
    %v1310 = vunpack.c.l.b16 %v671
    %v1311 = vunpack.c.l.b16 %v672
    %v1312 = vunpack.c.l.b16 %v673
    %v1313 = vunpack.c.l.b16 %v674
    %v1314 = vunpack.c.l.b16 %v675
    %v1315 = vunpack.c.l.b16 %v676
    %v1316 = vunpack.c.l.b16 %v677
    %v1317 = vunpack.c.l.b16 %v678
    %v1318 = vunpack.c.l.b16 %v679
    %v1319 = vunpack.c.l.b16 %v680
    %v1320 = vunpack.c.l.b16 %v681
    %v1321 = vunpack.c.l.b16 %v682
    %v1322 = vunpack.c.l.b16 %v683
    %v1323 = vunpack.c.l.b16 %v684
    %v1324 = vunpack.c.l.b16 %v685
    %v1325 = vunpack.c.l.b16 %v686
    %v1326 = vunpack.c.l.b16 %v687
    %v1327 = vunpack.c.l.b16 %v688
    %v1328 = vunpack.c.l.b16 %v689
    %v1329 = vunpack.c.l.b16 %v690
    %v1330 = vunpack.c.l.b16 %v691
    %v1331 = vunpack.c.l.b16 %v692
    %v1332 = vunpack.c.l.b16 %v693
    %v1333 = vunpack.c.l.b16 %v694
    %v1334 = vunpack.c.l.b16 %v695
    %v1335 = vunpack.c.l.b16 %v696
    %v1336 = vunpack.c.l.b16 %v697
    %v1337 = vunpack.c.l.b16 %v698
    %v1338 = vunpack.c.l.b16 %v699
    %v1339 = vunpack.c.l.b16 %v700
    %v1340 = vunpack.c.l.b16 %v701
    %v1341 = vunpack.c.l.b16 %v702
    %v1342 = vunpack.c.l.b16 %v703
    %v1343 = vunpack.c.l.b16 %v704
    %v1344 = vunpack.c.l.b16 %v705
    %v1345 = vunpack.c.l.b16 %v706
    %v1346 = vunpack.c.l.b16 %v707
    %v1347 = vunpack.c.l.b16 %v708
    %v1348 = vunpack.c.l.b16 %v709
    %v1349 = vunpack.c.l.b16 %v710
    %v1350 = vunpack.c.l.b16 %v711
    %v1351 = vunpack.c.l.b16 %v712
    %v1352 = vunpack.c.l.b16 %v713
    %v1353 = vunpack.c.l.b16 %v714
    %v1354 = vunpack.c.l.b16 %v715
    %v1355 = vunpack.c.l.b16 %v716
    %v1356 = vunpack.c.l.b16 %v717
    %v1357 = vunpack.c.l.b16 %v718
    %v1358 = vunpack.c.l.b16 %v719
    %v1359 = vunpack.c.l.b16 %v720
    %v1360 = vunpack.c.l.b16 %v721
    %v1361 = vunpack.c.l.b16 %v722
    %v1362 = vunpack.c.l.b16 %v723
    %v1363 = vunpack.c.l.b16 %v724
    %v1364 = vunpack.c.l.b16 %v725
    %v1365 = vunpack.c.l.b16 %v726
    %v1366 = vunpack.c.l.b16 %v727
    %v1367 = vunpack.c.l.b16 %v728
    %v1368 = vunpack.c.l.b16 %v729
    %v1369 = vunpack.c.l.b16 %v730
    %v1370 = vunpack.c.l.b16 %v731
    %v1371 = vunpack.c.l.b16 %v732
    %v1372 = vunpack.c.l.b16 %v733
    %v1373 = vunpack.c.l.b16 %v734
    %v1374 = vunpack.c.l.b16 %v735
    %v1375 = vunpack.c.l.b16 %v736
    %v1376 = vunpack.c.l.b16 %v737
    %v1377 = vunpack.c.l.b16 %v738
    %v1378 = vunpack.c.l.b16 %v739
    %v1379 = vunpack.c.l.b16 %v740
    %v1380 = vunpack.c.l.b16 %v741
    %v1381 = vunpack.c.l.b16 %v742
    %v1382 = vunpack.c.l.b16 %v743
    %v1383 = vunpack.c.l.b16 %v744
    %v1384 = vunpack.c.l.b16 %v745
    %v1385 = vunpack.c.l.b16 %v746
    %v1386 = vunpack.c.l.b16 %v747
    %v1387 = vunpack.c.l.b16 %v748
    %v1388 = vunpack.c.l.b16 %v749
    %v1389 = vunpack.c.l.b16 %v750
    %v1390 = vunpack.c.l.b16 %v751
    %v1391 = vunpack.c.l.b16 %v752
    %v1392 = vunpack.c.l.b16 %v753
    %v1393 = vunpack.c.l.b16 %v754
    %v1394 = vunpack.c.l.b16 %v755
    %v1395 = vunpack.c.l.b16 %v756
    %v1396 = vunpack.c.l.b16 %v757
    %v1397 = vunpack.c.l.b16 %v758
    %v1398 = vunpack.c.l.b16 %v759
    %v1399 = vunpack.c.l.b16 %v760
    %v1400 = vunpack.c.l.b16 %v761
    %v1401 = vunpack.c.l.b16 %v762
    %v1402 = vunpack.c.l.b16 %v763
    %v1403 = vunpack.c.l.b16 %v764
    %v1404 = vunpack.c.l.b16 %v765
    %v1405 = vunpack.c.l.b16 %v766
    %v1406 = vunpack.c.l.b16 %v767
    %v1407 = vunpack.c.l.b16 %v768
    %v1408 = vunpack.c.l.b16 %v769
    %v1409 = vunpack.c.l.b16 %v770
    %v1410 = vunpack.c.l.b16 %v771
    %v1411 = vunpack.c.l.b16 %v772
    %v1412 = vunpack.c.l.b16 %v773
    %v1413 = vunpack.c.l.b16 %v774
    %v1414 = vunpack.c.l.b16 %v775
    %v1415 = vunpack.c.l.b16 %v776
    %v1416 = vunpack.c.l.b16 %v777
    %v1417 = vunpack.c.l.b16 %v778
    %v1418 = vunpack.c.l.b16 %v779
    %v1419 = vunpack.c.l.b16 %v780
    %v1420 = vunpack.c.l.b16 %v781
    %v1421 = vunpack.c.l.b16 %v782
    %v1422 = vunpack.c.l.b16 %v783
    %v1423 = vunpack.c.l.b16 %v784
    %v1424 = vunpack.c.l.b16 %v785
    %v1425 = vunpack.c.l.b16 %v786
    %v1426 = vunpack.c.l.b16 %v787
    %v1427 = vunpack.c.l.b16 %v788
    %v1428 = vunpack.c.l.b16 %v789
    %v1429 = vunpack.c.l.b16 %v790
    %v1430 = vunpack.c.l.b16 %v791
    %v1431 = vunpack.c.l.b16 %v792
    %v1432 = vunpack.c.l.b16 %v793
    %v1433 = vunpack.c.l.b16 %v794
    %v1434 = vunpack.c.l.b16 %v795
    %v1435 = vunpack.c.l.b16 %v796
    %v1436 = vunpack.c.l.b16 %v797
    %v1437 = vunpack.c.l.b16 %v798
    %v1438 = vunpack.c.l.b16 %v799
    %v1439 = vunpack.c.l.b16 %v800
    %v1440 = vunpack.c.l.b16 %v801
    %v1441 = vunpack.c.l.b16 %v802
    %v1442 = vunpack.c.l.b16 %v803
    %v1443 = vunpack.c.l.b16 %v804
    %v1444 = vunpack.c.l.b16 %v805
    %v1445 = vpack.c.b16 %v1158, %v1157
    %v1446 = vpack.c.b16 %v1160, %v1159
    %v1447 = vpack.c.b16 %v1162, %v1161
    %v1448 = vpack.c.b16 %v1164, %v1163
    %v1449 = vpack.c.b16 %v1166, %v1165
    %v1450 = vpack.c.b16 %v1168, %v1167
    %v1451 = vpack.c.b16 %v1170, %v1169
    %v1452 = vpack.c.b16 %v1172, %v1171
    %v1453 = vpack.c.b16 %v1174, %v1173
    %v1454 = vpack.c.b16 %v1176, %v1175
    %v1455 = vpack.c.b16 %v1178, %v1177
    %v1456 = vpack.c.b16 %v1180, %v1179
    %v1457 = vpack.c.b16 %v1182, %v1181
    %v1458 = vpack.c.b16 %v1184, %v1183
    %v1459 = vpack.c.b16 %v1186, %v1185
    %v1460 = vpack.c.b16 %v1188, %v1187
    %v1461 = vpack.c.b16 %v1190, %v1189
    %v1462 = vpack.c.b16 %v1192, %v1191
    %v1463 = vpack.c.b16 %v1194, %v1193
    %v1464 = vpack.c.b16 %v1196, %v1195
    %v1465 = vpack.c.b16 %v1198, %v1197
    %v1466 = vpack.c.b16 %v1200, %v1199
    %v1467 = vpack.c.b16 %v1202, %v1201
    %v1468 = vpack.c.b16 %v1204, %v1203
    %v1469 = vpack.c.b16 %v1206, %v1205
    %v1470 = vpack.c.b16 %v1208, %v1207
    %v1471 = vpack.c.b16 %v1210, %v1209
    %v1472 = vpack.c.b16 %v1212, %v1211
    %v1473 = vpack.c.b16 %v1214, %v1213
    %v1474 = vpack.c.b16 %v1216, %v1215
    %v1475 = vpack.c.b16 %v1218, %v1217
    %v1476 = vpack.c.b16 %v1220, %v1219
    %v1477 = vpack.c.b16 %v1222, %v1221
    %v1478 = vpack.c.b16 %v1224, %v1223
    %v1479 = vpack.c.b16 %v1226, %v1225
    %v1480 = vpack.c.b16 %v1228, %v1227
    %v1481 = vpack.c.b16 %v1230, %v1229
    %v1482 = vpack.c.b16 %v1232, %v1231
    %v1483 = vpack.c.b16 %v1234, %v1233
    %v1484 = vpack.c.b16 %v1236, %v1235
    %v1485 = vpack.c.b16 %v1238, %v1237
    %v1486 = vpack.c.b16 %v1240, %v1239
    %v1487 = vpack.c.b16 %v1242, %v1241
    %v1488 = vpack.c.b16 %v1244, %v1243
    %v1489 = vpack.c.b16 %v1246, %v1245
    %v1490 = vpack.c.b16 %v1248, %v1247
    %v1491 = vpack.c.b16 %v1250, %v1249
    %v1492 = vpack.c.b16 %v1252, %v1251
    %v1493 = vpack.c.b16 %v1254, %v1253
    %v1494 = vpack.c.b16 %v1256, %v1255
    %v1495 = vpack.c.b16 %v1258, %v1257
    %v1496 = vpack.c.b16 %v1260, %v1259
    %v1497 = vpack.c.b16 %v1262, %v1261
    %v1498 = vpack.c.b16 %v1264, %v1263
    %v1499 = vpack.c.b16 %v1266, %v1265
    %v1500 = vpack.c.b16 %v1268, %v1267
    %v1501 = vpack.c.b16 %v1270, %v1269
    %v1502 = vpack.c.b16 %v1272, %v1271
    %v1503 = vpack.c.b16 %v1274, %v1273
    %v1504 = vpack.c.b16 %v1276, %v1275
    %v1505 = vpack.c.b16 %v1278, %v1277
    %v1506 = vpack.c.b16 %v1280, %v1279
    %v1507 = vpack.c.b16 %v1282, %v1281
    %v1508 = vpack.c.b16 %v1284, %v1283
    %v1509 = vpack.c.b16 %v1286, %v1285
    %v1510 = vpack.c.b16 %v1288, %v1287
    %v1511 = vpack.c.b16 %v1290, %v1289
    %v1512 = vpack.c.b16 %v1292, %v1291
    %v1513 = vpack.c.b16 %v1294, %v1293
    %v1514 = vpack.c.b16 %v1296, %v1295
    %v1515 = vpack.c.b16 %v1298, %v1297
    %v1516 = vpack.c.b16 %v1300, %v1299
    %v1517 = vpack.c.b16 %v1302, %v1301
    %v1518 = vpack.c.b16 %v1304, %v1303
    %v1519 = vpack.c.b16 %v1306, %v1305
    %v1520 = vpack.c.b16 %v1308, %v1307
    %v1521 = vpack.c.b16 %v1310, %v1309
    %v1522 = vpack.c.b16 %v1312, %v1311
    %v1523 = vpack.c.b16 %v1314, %v1313
    %v1524 = vpack.c.b16 %v1316, %v1315
    %v1525 = vpack.c.b16 %v1318, %v1317
    %v1526 = vpack.c.b16 %v1320, %v1319
    %v1527 = vpack.c.b16 %v1322, %v1321
    %v1528 = vpack.c.b16 %v1324, %v1323
    %v1529 = vpack.c.b16 %v1326, %v1325
    %v1530 = vpack.c.b16 %v1328, %v1327
    %v1531 = vpack.c.b16 %v1330, %v1329
    %v1532 = vpack.c.b16 %v1332, %v1331
    %v1533 = vpack.c.b16 %v1334, %v1333
    %v1534 = vpack.c.b16 %v1336, %v1335
    %v1535 = vpack.c.b16 %v1338, %v1337
    %v1536 = vpack.c.b16 %v1340, %v1339
    %v1537 = vpack.c.b16 %v1342, %v1341
    %v1538 = vpack.c.b16 %v1344, %v1343
    %v1539 = vpack.c.b16 %v1346, %v1345
    %v1540 = vpack.c.b16 %v1348, %v1347
    %v1541 = vpack.c.b16 %v1350, %v1349
    %v1542 = vpack.c.b16 %v1352, %v1351
    %v1543 = vpack.c.b16 %v1354, %v1353
    %v1544 = vpack.c.b16 %v1356, %v1355
    %v1545 = vpack.c.b16 %v1358, %v1357
    %v1546 = vpack.c.b16 %v1360, %v1359
    %v1547 = vpack.c.b16 %v1362, %v1361
    %v1548 = vpack.c.b16 %v1364, %v1363
    %v1549 = vpack.c.b16 %v1366, %v1365
    %v1550 = vpack.c.b16 %v1368, %v1367
    %v1551 = vpack.c.b16 %v1370, %v1369
    %v1552 = vpack.c.b16 %v1372, %v1371
    %v1553 = vpack.c.b16 %v1374, %v1373
    %v1554 = vpack.c.b16 %v1376, %v1375
    %v1555 = vpack.c.b16 %v1378, %v1377
    %v1556 = vpack.c.b16 %v1380, %v1379
    %v1557 = vpack.c.b16 %v1382, %v1381
    %v1558 = vpack.c.b16 %v1384, %v1383
    %v1559 = vpack.c.b16 %v1386, %v1385
    %v1560 = vpack.c.b16 %v1388, %v1387
    %v1561 = vpack.c.b16 %v1390, %v1389
    %v1562 = vpack.c.b16 %v1392, %v1391
    %v1563 = vpack.c.b16 %v1394, %v1393
    %v1564 = vpack.c.b16 %v1396, %v1395
    %v1565 = vpack.c.b16 %v1398, %v1397
    %v1566 = vpack.c.b16 %v1400, %v1399
    %v1567 = vpack.c.b16 %v1402, %v1401
    %v1568 = vpack.c.b16 %v1404, %v1403
    %v1569 = vpack.c.b16 %v1406, %v1405
    %v1570 = vpack.c.b16 %v1408, %v1407
    %v1571 = vpack.c.b16 %v1410, %v1409
    %v1572 = vpack.c.b16 %v1412, %v1411
    %v1573 = vpack.c.b16 %v1414, %v1413
    %v1574 = vpack.c.b16 %v1416, %v1415
    %v1575 = vpack.c.b16 %v1418, %v1417
    %v1576 = vpack.c.b16 %v1420, %v1419
    %v1577 = vpack.c.b16 %v1422, %v1421
    %v1578 = vpack.c.b16 %v1424, %v1423
    %v1579 = vpack.c.b16 %v1426, %v1425
    %v1580 = vpack.c.b16 %v1428, %v1427
    %v1581 = vpack.c.b16 %v1430, %v1429
    %v1582 = vpack.c.b16 %v1432, %v1431
    %v1583 = vpack.c.b16 %v1434, %v1433
    %v1584 = vpack.c.b16 %v1436, %v1435
    %v1585 = vpack.c.b16 %v1438, %v1437
    %v1586 = vpack.c.b16 %v1440, %v1439
    %v1587 = vpack.c.b16 %v1442, %v1441
    %v1588 = vpack.c.b16 %v1444, %v1443
    %1733 = vmatpush.bf16.msra.mxu0 %v1452
    %1734 = vmatpush.bf16.msra.mxu0 %v1451
    %1735 = vmatpush.bf16.msra.mxu0 %v1450
    %1736 = vmatpush.bf16.msra.mxu0 %v1449
    %1737 = vmatpush.bf16.msra.mxu0 %v1448
    %1738 = vmatpush.bf16.msra.mxu0 %v1447
    %1739 = vmatpush.bf16.msra.mxu0 %v1446
    %1740 = vmatpush.bf16.msra.mxu0 %v1445
    %1741 = vmatmul.bf16.gmra.mxu0 %v833
    %v1742 = vpop.f32.mrf.mxu0
    %v1743 = vadd.f32 0.0, %v1742
    %v1744 = vpop.f32.mrf.mxu0
    %1745 = vdwg.mxu0
    %1746 = vmatpush.bf16.msra.mxu0 %v1460
    %1747 = vmatpush.bf16.msra.mxu0 %v1459
    %1748 = vmatpush.bf16.msra.mxu0 %v1458
    %1749 = vmatpush.bf16.msra.mxu0 %v1457
    %1750 = vmatpush.bf16.msra.mxu0 %v1456
    %1751 = vmatpush.bf16.msra.mxu0 %v1455
    %1752 = vmatpush.bf16.msra.mxu0 %v1454
    %1753 = vmatpush.bf16.msra.mxu0 %v1453
    %1754 = vmatmul.bf16.gmra.mxu0 %v834
    %v1755 = vpop.f32.mrf.mxu0
    %v1756 = vadd.f32 %v1743, %v1755
    %v1757 = vpop.f32.mrf.mxu0
    %1758 = vdwg.mxu0
    %1759 = vmatpush.bf16.msra.mxu0 %v1468
    %1760 = vmatpush.bf16.msra.mxu0 %v1467
    %1761 = vmatpush.bf16.msra.mxu0 %v1466
    %1762 = vmatpush.bf16.msra.mxu0 %v1465
    %1763 = vmatpush.bf16.msra.mxu0 %v1464
    %1764 = vmatpush.bf16.msra.mxu0 %v1463
    %1765 = vmatpush.bf16.msra.mxu0 %v1462
    %1766 = vmatpush.bf16.msra.mxu0 %v1461
    %1767 = vmatmul.bf16.gmra.mxu0 %v835
    %v1768 = vpop.f32.mrf.mxu0
    %v1769 = vadd.f32 %v1756, %v1768
    %v1770 = vpop.f32.mrf.mxu0
    %1771 = vdwg.mxu0
    %1772 = vmatpush.bf16.msra.mxu0 %v1476
    %1773 = vmatpush.bf16.msra.mxu0 %v1475
    %1774 = vmatpush.bf16.msra.mxu0 %v1474
    %1775 = vmatpush.bf16.msra.mxu0 %v1473
    %1776 = vmatpush.bf16.msra.mxu0 %v1472
    %1777 = vmatpush.bf16.msra.mxu0 %v1471
    %1778 = vmatpush.bf16.msra.mxu0 %v1470
    %1779 = vmatpush.bf16.msra.mxu0 %v1469
    %1780 = vmatmul.bf16.gmra.mxu0 %v836
    %v1781 = vpop.f32.mrf.mxu0
    %v1782 = vadd.f32 %v1769, %v1781
    %v1783 = vpop.f32.mrf.mxu0
    %1784 = vdwg.mxu0
    %1785 = vmatpush.bf16.msra.mxu0 %v1484
    %1786 = vmatpush.bf16.msra.mxu0 %v1483
    %1787 = vmatpush.bf16.msra.mxu0 %v1482
    %1788 = vmatpush.bf16.msra.mxu0 %v1481
    %1789 = vmatpush.bf16.msra.mxu0 %v1480
    %1790 = vmatpush.bf16.msra.mxu0 %v1479
    %1791 = vmatpush.bf16.msra.mxu0 %v1478
    %1792 = vmatpush.bf16.msra.mxu0 %v1477
    %1793 = vmatmul.bf16.gmra.mxu0 %v837
    %v1794 = vpop.f32.mrf.mxu0
    %v1795 = vadd.f32 %v1782, %v1794
    %v1796 = vpop.f32.mrf.mxu0
    %1797 = vdwg.mxu0
    %1798 = vmatpush.bf16.msra.mxu0 %v1492
    %1799 = vmatpush.bf16.msra.mxu0 %v1491
    %1800 = vmatpush.bf16.msra.mxu0 %v1490
    %1801 = vmatpush.bf16.msra.mxu0 %v1489
    %1802 = vmatpush.bf16.msra.mxu0 %v1488
    %1803 = vmatpush.bf16.msra.mxu0 %v1487
    %1804 = vmatpush.bf16.msra.mxu0 %v1486
    %1805 = vmatpush.bf16.msra.mxu0 %v1485
    %1806 = vmatmul.bf16.gmra.mxu0 %v838
    %v1807 = vpop.f32.mrf.mxu0
    %v1808 = vadd.f32 %v1795, %v1807
    %v1809 = vpop.f32.mrf.mxu0
    %1810 = vdwg.mxu0
    %1811 = vmatpush.bf16.msra.mxu0 %v1500
    %1812 = vmatpush.bf16.msra.mxu0 %v1499
    %1813 = vmatpush.bf16.msra.mxu0 %v1498
    %1814 = vmatpush.bf16.msra.mxu0 %v1497
    %1815 = vmatpush.bf16.msra.mxu0 %v1496
    %1816 = vmatpush.bf16.msra.mxu0 %v1495
    %1817 = vmatpush.bf16.msra.mxu0 %v1494
    %1818 = vmatpush.bf16.msra.mxu0 %v1493
    %1819 = vmatmul.bf16.gmra.mxu0 %v839
    %v1820 = vpop.f32.mrf.mxu0
    %v1821 = vadd.f32 %v1808, %v1820
    %v1822 = vpop.f32.mrf.mxu0
    %1823 = vdwg.mxu0
    %1824 = vmatpush.bf16.msra.mxu0 %v1508
    %1825 = vmatpush.bf16.msra.mxu0 %v1507
    %1826 = vmatpush.bf16.msra.mxu0 %v1506
    %1827 = vmatpush.bf16.msra.mxu0 %v1505
    %1828 = vmatpush.bf16.msra.mxu0 %v1504
    %1829 = vmatpush.bf16.msra.mxu0 %v1503
    %1830 = vmatpush.bf16.msra.mxu0 %v1502
    %1831 = vmatpush.bf16.msra.mxu0 %v1501
    %1832 = vmatmul.bf16.gmra.mxu0 %v840
    %v1833 = vpop.f32.mrf.mxu0
    %v1834 = vadd.f32 %v1821, %v1833
    %v1835 = vpop.f32.mrf.mxu0
    %1836 = vdwg.mxu0
    %1837 = vmatpush.bf16.msra.mxu0 %v1516
    %1838 = vmatpush.bf16.msra.mxu0 %v1515
    %1839 = vmatpush.bf16.msra.mxu0 %v1514
    %1840 = vmatpush.bf16.msra.mxu0 %v1513
    %1841 = vmatpush.bf16.msra.mxu0 %v1512
    %1842 = vmatpush.bf16.msra.mxu0 %v1511
    %1843 = vmatpush.bf16.msra.mxu0 %v1510
    %1844 = vmatpush.bf16.msra.mxu0 %v1509
    %1845 = vmatmul.bf16.gmra.mxu0 %v841
    %v1846 = vpop.f32.mrf.mxu0
    %v1847 = vadd.f32 %v1834, %v1846
    %v1848 = vpop.f32.mrf.mxu0
    %1849 = vdwg.mxu0
    %1850 = vmatpush.bf16.msra.mxu0 %v1524
    %1851 = vmatpush.bf16.msra.mxu0 %v1523
    %1852 = vmatpush.bf16.msra.mxu0 %v1522
    %1853 = vmatpush.bf16.msra.mxu0 %v1521
    %1854 = vmatpush.bf16.msra.mxu0 %v1520
    %1855 = vmatpush.bf16.msra.mxu0 %v1519
    %1856 = vmatpush.bf16.msra.mxu0 %v1518
    %1857 = vmatpush.bf16.msra.mxu0 %v1517
    %1858 = vmatmul.bf16.gmra.mxu0 %v842
    %v1859 = vpop.f32.mrf.mxu0
    %v1860 = vadd.f32 %v1847, %v1859
    %v1861 = vpop.f32.mrf.mxu0
    %1862 = vdwg.mxu0
    %1863 = vmatpush.bf16.msra.mxu0 %v1532
    %1864 = vmatpush.bf16.msra.mxu0 %v1531
    %1865 = vmatpush.bf16.msra.mxu0 %v1530
    %1866 = vmatpush.bf16.msra.mxu0 %v1529
    %1867 = vmatpush.bf16.msra.mxu0 %v1528
    %1868 = vmatpush.bf16.msra.mxu0 %v1527
    %1869 = vmatpush.bf16.msra.mxu0 %v1526
    %1870 = vmatpush.bf16.msra.mxu0 %v1525
    %1871 = vmatmul.bf16.gmra.mxu0 %v843
    %v1872 = vpop.f32.mrf.mxu0
    %v1873 = vadd.f32 %v1860, %v1872
    %v1874 = vpop.f32.mrf.mxu0
    %1875 = vdwg.mxu0
    %1876 = vmatpush.bf16.msra.mxu0 %v1540
    %1877 = vmatpush.bf16.msra.mxu0 %v1539
    %1878 = vmatpush.bf16.msra.mxu0 %v1538
    %1879 = vmatpush.bf16.msra.mxu0 %v1537
    %1880 = vmatpush.bf16.msra.mxu0 %v1536
    %1881 = vmatpush.bf16.msra.mxu0 %v1535
    %1882 = vmatpush.bf16.msra.mxu0 %v1534
    %1883 = vmatpush.bf16.msra.mxu0 %v1533
    %1884 = vmatmul.bf16.gmra.mxu0 %v844
    %v1885 = vpop.f32.mrf.mxu0
    %v1886 = vadd.f32 %v1873, %v1885
    %v1887 = vpop.f32.mrf.mxu0
    %1888 = vdwg.mxu0
    %1889 = vmatpush.bf16.msra.mxu0 %v1548
    %1890 = vmatpush.bf16.msra.mxu0 %v1547
    %1891 = vmatpush.bf16.msra.mxu0 %v1546
    %1892 = vmatpush.bf16.msra.mxu0 %v1545
    %1893 = vmatpush.bf16.msra.mxu0 %v1544
    %1894 = vmatpush.bf16.msra.mxu0 %v1543
    %1895 = vmatpush.bf16.msra.mxu0 %v1542
    %1896 = vmatpush.bf16.msra.mxu0 %v1541
    %1897 = vmatmul.bf16.gmra.mxu0 %v845
    %v1898 = vpop.f32.mrf.mxu0
    %v1899 = vadd.f32 %v1886, %v1898
    %v1900 = vpop.f32.mrf.mxu0
    %1901 = vdwg.mxu0
    %1902 = vmatpush.bf16.msra.mxu0 %v1556
    %1903 = vmatpush.bf16.msra.mxu0 %v1555
    %1904 = vmatpush.bf16.msra.mxu0 %v1554
    %1905 = vmatpush.bf16.msra.mxu0 %v1553
    %1906 = vmatpush.bf16.msra.mxu0 %v1552
    %1907 = vmatpush.bf16.msra.mxu0 %v1551
    %1908 = vmatpush.bf16.msra.mxu0 %v1550
    %1909 = vmatpush.bf16.msra.mxu0 %v1549
    %1910 = vmatmul.bf16.gmra.mxu0 %v846
    %v1911 = vpop.f32.mrf.mxu0
    %v1912 = vadd.f32 %v1899, %v1911
    %v1913 = vpop.f32.mrf.mxu0
    %1914 = vdwg.mxu0
    %1915 = vmatpush.bf16.msra.mxu0 %v1564
    %1916 = vmatpush.bf16.msra.mxu0 %v1563
    %1917 = vmatpush.bf16.msra.mxu0 %v1562
    %1918 = vmatpush.bf16.msra.mxu0 %v1561
    %1919 = vmatpush.bf16.msra.mxu0 %v1560
    %1920 = vmatpush.bf16.msra.mxu0 %v1559
    %1921 = vmatpush.bf16.msra.mxu0 %v1558
    %1922 = vmatpush.bf16.msra.mxu0 %v1557
    %1923 = vmatmul.bf16.gmra.mxu0 %v847
    %v1924 = vpop.f32.mrf.mxu0
    %v1925 = vadd.f32 %v1912, %v1924
    %v1926 = vpop.f32.mrf.mxu0
    %1927 = vdwg.mxu0
    %1928 = vmatpush.bf16.msra.mxu0 %v1572
    %1929 = vmatpush.bf16.msra.mxu0 %v1571
    %1930 = vmatpush.bf16.msra.mxu0 %v1570
    %1931 = vmatpush.bf16.msra.mxu0 %v1569
    %1932 = vmatpush.bf16.msra.mxu0 %v1568
    %1933 = vmatpush.bf16.msra.mxu0 %v1567
    %1934 = vmatpush.bf16.msra.mxu0 %v1566
    %1935 = vmatpush.bf16.msra.mxu0 %v1565
    %1936 = vmatmul.bf16.gmra.mxu0 %v848
    %v1937 = vpop.f32.mrf.mxu0
    %v1938 = vadd.f32 %v1925, %v1937
    %v1939 = vpop.f32.mrf.mxu0
    %1940 = vdwg.mxu0
    %1941 = vmatpush.bf16.msra.mxu0 %v1580
    %1942 = vmatpush.bf16.msra.mxu0 %v1579
    %1943 = vmatpush.bf16.msra.mxu0 %v1578
    %1944 = vmatpush.bf16.msra.mxu0 %v1577
    %1945 = vmatpush.bf16.msra.mxu0 %v1576
    %1946 = vmatpush.bf16.msra.mxu0 %v1575
    %1947 = vmatpush.bf16.msra.mxu0 %v1574
    %1948 = vmatpush.bf16.msra.mxu0 %v1573
    %1949 = vmatmul.bf16.gmra.mxu0 %v849
    %v1950 = vpop.f32.mrf.mxu0
    %v1951 = vadd.f32 %v1938, %v1950
    %v1952 = vpop.f32.mrf.mxu0
    %1953 = vdwg.mxu0
    %1954 = vmatpush.bf16.msra.mxu0 %v1588
    %1955 = vmatpush.bf16.msra.mxu0 %v1587
    %1956 = vmatpush.bf16.msra.mxu0 %v1586
    %1957 = vmatpush.bf16.msra.mxu0 %v1585
    %1958 = vmatpush.bf16.msra.mxu0 %v1584
    %1959 = vmatpush.bf16.msra.mxu0 %v1583
    %1960 = vmatpush.bf16.msra.mxu0 %v1582
    %1961 = vmatpush.bf16.msra.mxu0 %v1581
    %1962 = vmatmul.bf16.gmra.mxu0 %v850
    %v1963 = vpop.f32.mrf.mxu0
    %v1964 = vadd.f32 %v1951, %v1963
    %v1965 = vpop.f32.mrf.mxu0
    %1966 = vdwg.mxu0
    %v1967 = vadd.f32 %v506, %v1964
    %v1968 = vld [vmem:[%s6] sm:$0x1]
    %v1970 = vperm.slane %v1968, 0
    %v1972 = vadd.f32 %v1967, %v1970
    %v1973 = vmax.f32 %v1972, 0.0
    %v1974 = vpack.c.bf16 %v1973, %v1973
    %v1975 = vld [vmem:[%s7] sm:$0xf]
    %v1976 = vld [vmem:[%s7 + $0x4] sm:$0xf]
    %v1977 = vld [vmem:[%s7 + $0x8] sm:$0xf]
    %v1978 = vld [vmem:[%s7 + $0xc] sm:$0xf]
    %v1979 = vld [vmem:[%s7 + $0x10] sm:$0xf]
    %v1980 = vld [vmem:[%s7 + $0x14] sm:$0xf]
    %v1981 = vld [vmem:[%s7 + $0x18] sm:$0xf]
    %v1982 = vld [vmem:[%s7 + $0x1c] sm:$0xf]
    %v1983 = vld [vmem:[%s7 + $0x20] sm:$0xf]
    %v1984 = vld [vmem:[%s7 + $0x24] sm:$0xf]
    %v1985 = vld [vmem:[%s7 + $0x28] sm:$0xf]
    %v1986 = vld [vmem:[%s7 + $0x2c] sm:$0xf]
    %v1987 = vld [vmem:[%s7 + $0x30] sm:$0xf]
    %v1988 = vld [vmem:[%s7 + $0x34] sm:$0xf]
    %v1989 = vld [vmem:[%s7 + $0x38] sm:$0xf]
    %v1990 = vld [vmem:[%s7 + $0x3c] sm:$0xf]
    %v1991 = vld [vmem:[%s8] sm:$0x1]
    %v1993 = vperm.slane %v1991, 0
    %v2011 = vunpack.c.l.b16 %v1975
    %v2012 = vunpack.c.l.b16 %v1976
    %v2013 = vunpack.c.l.b16 %v1977
    %v2014 = vunpack.c.l.b16 %v1978
    %v2015 = vunpack.c.l.b16 %v1979
    %v2016 = vunpack.c.l.b16 %v1980
    %v2017 = vunpack.c.l.b16 %v1981
    %v2018 = vunpack.c.l.b16 %v1982
    %v2019 = vunpack.c.l.b16 %v1983
    %v2020 = vunpack.c.l.b16 %v1984
    %v2021 = vunpack.c.l.b16 %v1985
    %v2022 = vunpack.c.l.b16 %v1986
    %v2023 = vunpack.c.l.b16 %v1987
    %v2024 = vunpack.c.l.b16 %v1988
    %v2025 = vunpack.c.l.b16 %v1989
    %v2026 = vunpack.c.l.b16 %v1990
    %v2027 = vpack.c.b16 %v2012, %v2011
    %v2028 = vpack.c.b16 %v2014, %v2013
    %v2029 = vpack.c.b16 %v2016, %v2015
    %v2030 = vpack.c.b16 %v2018, %v2017
    %v2031 = vpack.c.b16 %v2020, %v2019
    %v2032 = vpack.c.b16 %v2022, %v2021
    %v2033 = vpack.c.b16 %v2024, %v2023
    %v2034 = vpack.c.b16 %v2026, %v2025
    %2043 = vmatpush.bf16.msra.mxu0 %v2034
    %2044 = vmatpush.bf16.msra.mxu0 %v2033
    %2045 = vmatpush.bf16.msra.mxu0 %v2032
    %2046 = vmatpush.bf16.msra.mxu0 %v2031
    %2047 = vmatpush.bf16.msra.mxu0 %v2030
    %2048 = vmatpush.bf16.msra.mxu0 %v2029
    %2049 = vmatpush.bf16.msra.mxu0 %v2028
    %2050 = vmatpush.bf16.msra.mxu0 %v2027
    %2051 = vmatmul.bf16.gmra.mxu0 %v1974
    %v2052 = vpop.f32.mrf.mxu0
    %v2053 = vadd.f32 %v1993, %v2052
    %v2054 = vpop.f32.mrf.mxu0
    %2055 = vdwg.mxu0
    %v2056 = vmax.f32 %v2053, 0.0
    %v2057 = vpack.c.bf16 %v2056, %v2056
    %v2058 = vld [vmem:[#allocation6] sm:$0xf]
    %v2059 = vld [vmem:[#allocation6 + $0x4] sm:$0xf]
    %v2060 = vld [vmem:[#allocation6 + $0x8] sm:$0xf]
    %v2061 = vld [vmem:[#allocation6 + $0xc] sm:$0xf]
    %v2062 = vld [vmem:[#allocation6 + $0x10] sm:$0xf]
    %v2063 = vld [vmem:[#allocation6 + $0x14] sm:$0xf]
    %v2064 = vld [vmem:[#allocation6 + $0x18] sm:$0xf]
    %v2065 = vld [vmem:[#allocation6 + $0x1c] sm:$0xf]
    %v2066 = vld [vmem:[#allocation6 + $0x20] sm:$0xf]
    %v2067 = vld [vmem:[#allocation6 + $0x24] sm:$0xf]
    %v2068 = vld [vmem:[#allocation6 + $0x28] sm:$0xf]
    %v2069 = vld [vmem:[#allocation6 + $0x2c] sm:$0xf]
    %v2070 = vld [vmem:[#allocation6 + $0x30] sm:$0xf]
    %v2071 = vld [vmem:[#allocation6 + $0x34] sm:$0xf]
    %v2072 = vld [vmem:[#allocation6 + $0x38] sm:$0xf]
    %v2073 = vld [vmem:[#allocation6 + $0x3c] sm:$0xf]
    %v2074 = vld [vmem:[%s10] sm:$0x1]
    %v2076 = vperm.slane %v2074, 0
    %v2094 = vunpack.c.l.b16 %v2058
    %v2095 = vunpack.c.l.b16 %v2059
    %v2096 = vunpack.c.l.b16 %v2060
    %v2097 = vunpack.c.l.b16 %v2061
    %v2098 = vunpack.c.l.b16 %v2062
    %v2099 = vunpack.c.l.b16 %v2063
    %v2100 = vunpack.c.l.b16 %v2064
    %v2101 = vunpack.c.l.b16 %v2065
    %v2102 = vunpack.c.l.b16 %v2066
    %v2103 = vunpack.c.l.b16 %v2067
    %v2104 = vunpack.c.l.b16 %v2068
    %v2105 = vunpack.c.l.b16 %v2069
    %v2106 = vunpack.c.l.b16 %v2070
    %v2107 = vunpack.c.l.b16 %v2071
    %v2108 = vunpack.c.l.b16 %v2072
    %v2109 = vunpack.c.l.b16 %v2073
    %v2110 = vpack.c.b16 %v2095, %v2094
    %v2111 = vpack.c.b16 %v2097, %v2096
    %v2112 = vpack.c.b16 %v2099, %v2098
    %v2113 = vpack.c.b16 %v2101, %v2100
    %v2114 = vpack.c.b16 %v2103, %v2102
    %v2115 = vpack.c.b16 %v2105, %v2104
    %v2116 = vpack.c.b16 %v2107, %v2106
    %v2117 = vpack.c.b16 %v2109, %v2108
    %2126 = vmatpush.bf16.msra.mxu0 %v2117
    %2127 = vmatpush.bf16.msra.mxu0 %v2116
    %2128 = vmatpush.bf16.msra.mxu0 %v2115
    %2129 = vmatpush.bf16.msra.mxu0 %v2114
    %2130 = vmatpush.bf16.msra.mxu0 %v2113
    %2131 = vmatpush.bf16.msra.mxu0 %v2112
    %2132 = vmatpush.bf16.msra.mxu0 %v2111
    %2133 = vmatpush.bf16.msra.mxu0 %v2110
    %2134 = vmatmul.bf16.gmra.mxu0 %v2057
    %v2135 = vpop.f32.mrf.mxu0
    %v2136 = vadd.f32 %v2076, %v2135
    %v2137 = vpop.f32.mrf.mxu0
    %2138 = vdwg.mxu0
    %v2139 = vmax.f32 %v2136, 0.0
    %v2140 = vpack.c.bf16 %v2139, %v2139
    %v2141 = vld [vmem:[#allocation7] sm:$0xf]
    %v2142 = vld [vmem:[#allocation7 + $0x4] sm:$0xf]
    %v2143 = vld [vmem:[#allocation7 + $0x8] sm:$0xf]
    %v2144 = vld [vmem:[#allocation7 + $0xc] sm:$0xf]
    %v2145 = vld [vmem:[#allocation7 + $0x10] sm:$0xf]
    %v2146 = vld [vmem:[#allocation7 + $0x14] sm:$0xf]
    %v2147 = vld [vmem:[#allocation7 + $0x18] sm:$0xf]
    %v2148 = vld [vmem:[#allocation7 + $0x1c] sm:$0xf]
    %v2149 = vld [vmem:[#allocation7 + $0x20] sm:$0xf]
    %v2150 = vld [vmem:[#allocation7 + $0x24] sm:$0xf]
    %v2151 = vld [vmem:[#allocation7 + $0x28] sm:$0xf]
    %v2152 = vld [vmem:[#allocation7 + $0x2c] sm:$0xf]
    %v2153 = vld [vmem:[#allocation7 + $0x30] sm:$0xf]
    %v2154 = vld [vmem:[#allocation7 + $0x34] sm:$0xf]
    %v2155 = vld [vmem:[#allocation7 + $0x38] sm:$0xf]
    %v2156 = vld [vmem:[#allocation7 + $0x3c] sm:$0xf]
    %v2157 = vld [vmem:[%s12] sm:$0x1]
    %v2159 = vperm.slane %v2157, 0
    %v2177 = vunpack.c.l.b16 %v2141
    %v2178 = vunpack.c.l.b16 %v2142
    %v2179 = vunpack.c.l.b16 %v2143
    %v2180 = vunpack.c.l.b16 %v2144
    %v2181 = vunpack.c.l.b16 %v2145
    %v2182 = vunpack.c.l.b16 %v2146
    %v2183 = vunpack.c.l.b16 %v2147
    %v2184 = vunpack.c.l.b16 %v2148
    %v2185 = vunpack.c.l.b16 %v2149
    %v2186 = vunpack.c.l.b16 %v2150
    %v2187 = vunpack.c.l.b16 %v2151
    %v2188 = vunpack.c.l.b16 %v2152
    %v2189 = vunpack.c.l.b16 %v2153
    %v2190 = vunpack.c.l.b16 %v2154
    %v2191 = vunpack.c.l.b16 %v2155
    %v2192 = vunpack.c.l.b16 %v2156
    %v2193 = vpack.c.b16 %v2178, %v2177
    %v2194 = vpack.c.b16 %v2180, %v2179
    %v2195 = vpack.c.b16 %v2182, %v2181
    %v2196 = vpack.c.b16 %v2184, %v2183
    %v2197 = vpack.c.b16 %v2186, %v2185
    %v2198 = vpack.c.b16 %v2188, %v2187
    %v2199 = vpack.c.b16 %v2190, %v2189
    %v2200 = vpack.c.b16 %v2192, %v2191
    %2209 = vmatpush.bf16.msra.mxu0 %v2200
    %2210 = vmatpush.bf16.msra.mxu0 %v2199
    %2211 = vmatpush.bf16.msra.mxu0 %v2198
    %2212 = vmatpush.bf16.msra.mxu0 %v2197
    %2213 = vmatpush.bf16.msra.mxu0 %v2196
    %2214 = vmatpush.bf16.msra.mxu0 %v2195
    %2215 = vmatpush.bf16.msra.mxu0 %v2194
    %2216 = vmatpush.bf16.msra.mxu0 %v2193
    %2217 = vmatmul.bf16.gmra.mxu0 %v2140
    %v2218 = vpop.f32.mrf.mxu0
    %v2219 = vadd.f32 %v2159, %v2218
    %v2220 = vpop.f32.mrf.mxu0
    %2221 = vdwg.mxu0
    %2222 = vst [vmem:[%s13] sm:$0xff] %v2219
    // Predicated region
    $region70: #{ffn_agent_head_with_reaction_class.1} parent=1 // pred_check
      _
    $region71: #{ffn_agent_head_with_reaction_class.1} parent=1 // pred_check_branch
      %2224 = sbr.rel (0) target = $region73
    $region72: #{ffn_agent_head_with_reaction_class.1} parent=1 // pred_region
      _
    $region73: #{ffn_agent_head_with_reaction_class.1} parent=1 // pred_fallthru
      _
    // Predicated region
    $region74: #{ffn_agent_head_with_reaction_class.1} parent=1 // pred_check
      _
    $region75: #{ffn_agent_head_with_reaction_class.1} parent=1 // pred_check_branch
      %2226 = sbr.rel (0) target = $region77
    $region76: #{ffn_agent_head_with_reaction_class.1} parent=1 // pred_region
      _
    $region77: #{ffn_agent_head_with_reaction_class.1} parent=1 // pred_fallthru
      _
    %2227 = vsyncpa [#allocation3], 1
    %2228 = vsyncpa [#allocation5], 1
    %2229 = vsyncpa [#allocation8], 1

</llo_original>
